<compile_context>
chip_gen: v6e
topology: v6e:2x2x1
jax: 0.10.0
libtpu: 0.0.40
codegen_flags: <defaults>
</compile_context>

<pallas_src>
import functools

import jax
import jax.numpy as jnp
from jax.experimental import pallas as pl
from jax.experimental.pallas import tpu as pltpu

LANE = 128


def _round_up(x, n):
    return (x + n - 1) // n * n


def casadi_expr_kernel(xu_ref, w_ref, o_ref, *, n_half):
    # One fused MXU matmul: (TB, K_pad) @ (K_pad, 2*n_half) -> (TB, 2*n_half).
    y = jnp.dot(xu_ref[...], w_ref[...], preferred_element_type=jnp.float32)
    ax = y[:, :n_half]          # x @ A_t   (split at lane-128 boundary: vreg-aligned)
    bu = y[:, n_half:]          # u @ B_t
    o_ref[...] = (jnp.sin(ax) + bu).astype(o_ref.dtype)


def prepare_weights(a_t, b_t):
    """Pack A_t (n_x, m) and B_t (n_u, m) into one lane-padded block-diagonal
    weight W of shape (K_pad, 2*N_half). Done once, outside the hot path."""
    n_x, m = a_t.shape
    n_u, m2 = b_t.shape
    assert m2 == m
    k_pad = _round_up(n_x + n_u, LANE)
    n_half = _round_up(m, LANE)
    w = jnp.zeros((k_pad, 2 * n_half), dtype=jnp.float32)
    w = w.at[:n_x, :m].set(a_t.astype(jnp.float32))
    w = w.at[n_x:n_x + n_u, n_half:n_half + m].set(b_t.astype(jnp.float32))
    return w, n_half, m


def casadi_expr_forward(x, u, w_packed, n_half, m, *, tb=128):
    """Pallas equivalent of CasadiExprModule.forward(x, u) -> (batch, m)."""
    batch, n_x = x.shape
    batch_u, n_u = u.shape
    assert batch_u == batch
    k_pad, two_n_half = w_packed.shape
    assert two_n_half == 2 * n_half

    # Wrapper-side layout plumbing: concatenate + zero-pad inputs to lane-dense
    # (batch_pad, K_pad); pad batch to a multiple of the row tile.
    batch_pad = _round_up(max(batch, tb), tb)
    xu = jnp.zeros((batch_pad, k_pad), dtype=jnp.float32)
    xu = xu.at[:batch, :n_x].set(x.astype(jnp.float32))
    xu = xu.at[:batch, n_x:n_x + n_u].set(u.astype(jnp.float32))

    grid = (batch_pad // tb,)

    cost = pl.CostEstimate(
        flops=2 * batch_pad * k_pad * two_n_half,
        transcendentals=batch_pad * n_half,
        bytes_accessed=4 * (batch_pad * k_pad
                            + k_pad * two_n_half
                            + batch_pad * n_half),
    )

    out_padded = pl.pallas_call(
        functools.partial(casadi_expr_kernel, n_half=n_half),
        out_shape=jax.ShapeDtypeStruct((batch_pad, n_half), jnp.float32),
        grid_spec=pltpu.PrefetchScalarGridSpec(
            num_scalar_prefetch=0,
            grid=grid,
            in_specs=[
                # One (TB, K_pad) row-tile per grid step.
                pl.BlockSpec((tb, k_pad), lambda b: (b, 0)),
                # Constant index_map -> packed weights stay VMEM-resident.
                pl.BlockSpec((k_pad, two_n_half), lambda b: (0, 0)),
            ],
            out_specs=pl.BlockSpec((tb, n_half), lambda b: (b, 0)),
        ),
        compiler_params=pltpu.CompilerParams(
            dimension_semantics=("parallel",),  # shards across v7x's 2 TCs; harmless on v5e/v6e
        ),
        cost_estimate=cost,
    )(xu, w_packed)

    # Slice the lane/batch padding back off outside the kernel.
    return out_padded[:batch, :m]


if __name__ == "__main__":
    # Batched evaluation of the synthetic CasADi expression. Batch large enough
    # to exercise the grid (2 tiles of 128 rows); feature dims are small, as in
    # typical MPC state/control vectors.
    batch, n_x, n_u, m = 256, 32, 16, 32

    key = jax.random.PRNGKey(0)
    kx, ku, ka, kb = jax.random.split(key, 4)

    x = jax.random.normal(kx, (batch, n_x), dtype=jnp.float32)
    u = jax.random.normal(ku, (batch, n_u), dtype=jnp.float32)

    # Deterministic constants of the synthetic CasADi expression,
    # stored pre-transposed as (n_in, n_out).
    a_t = jax.random.normal(ka, (n_x, m), dtype=jnp.float32) / jnp.sqrt(n_x)
    b_t = jax.random.normal(kb, (n_u, m), dtype=jnp.float32) / jnp.sqrt(n_u)

    # One-time weight packing (block-diagonal, lane-padded).
    w_packed, n_half, m_out = prepare_weights(a_t, b_t)

    out = casadi_expr_forward(x, u, w_packed, n_half, m_out, tb=128)
    out = jax.block_until_ready(out)

    # Pure-JAX reference of the same expression.
    ref = jnp.sin(x @ a_t) + u @ b_t
    assert out.shape == (batch, m)
    assert jnp.allclose(out, ref, atol=1e-5, rtol=1e-5)

    print("KERNEL_OK")
</pallas_src>

<mosaic_0001>
module attributes {stable_mosaic.version = 11 : i64} {
  func.func @casadi_expr_kernel(%arg0: i32, %arg1: memref<128x128xf32, #tpu.memory_space<vmem>>, %arg2: memref<128x256xf32, #tpu.memory_space<vmem>>, %arg3: memref<128x128xf32, #tpu.memory_space<vmem>>) attributes {dimension_semantics = [#tpu.dimension_semantics<parallel>], iteration_bounds = array<i64: 2>, scalar_prefetch = 0 : i64, scratch_operands = 0 : i64, tpu.core_type = #tpu.core_type<tc>, window_params = [{transform_indices = @transform_0, window_bounds = array<i64: 128, 128>}, {pipeline_mode = #tpu.pipeline_mode<synchronous>, transform_indices = @transform_1, window_bounds = array<i64: 128, 256>}, {transform_indices = @transform_2, window_bounds = array<i64: 128, 128>}]} {
    %c0 = arith.constant 0 : index
    %c0_0 = arith.constant 0 : index
    %0 = vector.load %arg1[%c0, %c0_0] : memref<128x128xf32, #tpu.memory_space<vmem>>, vector<128x128xf32>
    %c0_1 = arith.constant 0 : index
    %c0_2 = arith.constant 0 : index
    %1 = vector.load %arg2[%c0_1, %c0_2] : memref<128x256xf32, #tpu.memory_space<vmem>>, vector<128x256xf32>
    %cst = arith.constant dense<0.000000e+00> : vector<128x256xf32>
    %2 = tpu.matmul %0, %1, %cst {dimension_numbers = #tpu.dot_dimension_numbers<[1], [0], [0], [1], [0, 0, 1, 1], [], []>} : vector<128x128xf32>, vector<128x256xf32>, vector<128x256xf32> -> vector<128x256xf32>
    %3 = vector.extract_strided_slice %2 {offsets = [0, 0], sizes = [128, 128], strides = [1, 1]} : vector<128x256xf32> to vector<128x128xf32>
    %4 = vector.extract_strided_slice %2 {offsets = [0, 128], sizes = [128, 128], strides = [1, 1]} : vector<128x256xf32> to vector<128x128xf32>
    %5 = math.sin %3 : vector<128x128xf32>
    %6 = arith.addf %5, %4 : vector<128x128xf32>
    %c0_3 = arith.constant 0 : index
    %c0_4 = arith.constant 0 : index
    %7 = vector.load %arg3[%c0_3, %c0_4] : memref<128x128xf32, #tpu.memory_space<vmem>>, vector<128x128xf32>
    tpu.vector_store %arg3[%c0_3, %c0_4], %6 {strides = array<i32>} : memref<128x128xf32, #tpu.memory_space<vmem>>, vector<128x128xf32>,
    return
  }
  func.func @transform_0(%arg0: i32) -> (i32, i32) {
    %c0_i32 = arith.constant 0 : i32
    %c0_i32_0 = arith.constant 0 : i32
    return %arg0, %c0_i32 : i32, i32
  }
  func.func @transform_1(%arg0: i32) -> (i32, i32) {
    %c0_i32 = arith.constant 0 : i32
    %c0_i32_0 = arith.constant 0 : i32
    %c0_i32_1 = arith.constant 0 : i32
    return %c0_i32, %c0_i32_0 : i32, i32
  }
  func.func @transform_2(%arg0: i32) -> (i32, i32) {
    %c0_i32 = arith.constant 0 : i32
    %c0_i32_0 = arith.constant 0 : i32
    return %arg0, %c0_i32 : i32, i32
  }
}

</mosaic_0001>

<llo_original>
// kernel: tpu_custom_call.1
$region0: #{tpu_custom_call.1}
  #allocation0 [shape = 'u32[]', space=smem, size = 0x4, offset = 0x4, fixed_abs, tag = 'smem constant byte address 0x4 - core index']
  #allocation1 [shape = 'u32[144,128]{1,0:T(1,128)}', space=vmem, size = 0x12000, scoped, tag = 'internal scratch']
  %s0 = inlined_call_operand.hbm [shape: f32[256,128], index: 0, kind: input, shape index: {}]
  %s1 = inlined_call_operand.hbm [shape: f32[128,256], index: 1, kind: input, shape index: {}]
  %s2 = inlined_call_operand.hbm [shape: f32[256,128], index: 2, kind: output, shape index: {}]
  %s3 = sld [smem:[#allocation0]]
  $region49: #{tpu_custom_call.1} parent=0
    _
  %s5 = ssub.s32 1, %s3
  %s6 = scalar_select 0, %s5, %s3
  $region1: #{tpu_custom_call.1} parent=0
    #allocation2 [shape = 'u8[131072]{0}', space=vmem, size = 0x20000, scoped, tag = 'input window, operand 0']
    #allocation3 [shape = 's32[2]{0}', space=sflag, size = 0x8, scoped, tag = 'scoped memory for tpu_custom_call.1']
    #allocation4 [shape = 's32[2]{0}', space=sflag, size = 0x8, scoped, tag = 'scoped memory for tpu_custom_call.1']
    #allocation5 [shape = 'u8[131072]{0}', space=vmem, size = 0x20000, scoped, tag = 'input window, operand 1, single buffered']
    #allocation6 [shape = 's32[1]{0}', space=sflag, size = 0x4, scoped, tag = 'scoped memory for tpu_custom_call.1']
    #allocation7 [shape = 'u8[131072]{0}', space=vmem, size = 0x20000, scoped, tag = 'output window, operand 0']
    %7 = vsyncpa [#allocation3], 0
    %s8 = scalar_lea.sflag [#allocation3], 1
    %9 = vsyncpa %s8, 0
    %10 = vsyncpa [#allocation6], 0
    %11 = vsyncpa [#allocation4], 0
    %s12 = scalar_lea.sflag [#allocation4], 1
    %13 = vsyncpa %s12, 0
    loop: start=0, step=1, limit=4
    $region2: #{tpu_custom_call.1} parent=1 // loop_pre_header
      _
    $region3: #{tpu_custom_call.1} parent=1 // loop_header
      %s15 = sphi 0, %s19
      %p16 = scmp.ge.s32.totalorder %s15, 4
      %s25 = sphi 0, %s27
      %s28 = sphi 0, %s25
      %s29 = sphi 0, %s28
      %s45 = sphi 0, %s29
      %s49 = sphi 0, %s49
      %s51 = sphi 0, %s49
      %s52 = sphi 0, %s51
      %s66 = sphi 0, %s52
      %s72 = sphi 0, %s74
      %s75 = sphi 0, %s72
      %s76 = sphi 0, %s75
      %s92 = sphi 0, %s76
    $region4: #{tpu_custom_call.1} parent=1 // loop_header_branch
      %18 = sbr.rel (%p16) target = $region8
    $region5: #{tpu_custom_call.1} parent=1 // loop_body
      %s20 = ssub.s32 %s15, 1
      %s21 = ssub.s32 %s15, 2
      %s22 = sadd.s32 %s15, 1
      %s23 = ssub.s32 %s15, %s22
      %p24 = scmp.eq.s32.totalorder %s23, 0
      %s26 = sadd.s32 %s25, 1
      %s27 = scalar_select %p24, %s25, %s26
      %p30 = pneg %p24
      %p31 = scmp.eq.s32.totalorder %s15, 1
      %p32 = por %p30, %p31
      %p33 = scmp.ne.s32.totalorder %s25, %s28
      %p34 = scmp.eq.s32.totalorder %s15, 0
      %p35 = por %p33, %p34
      %p36 = scmp.ne.s32.totalorder %s25, %s28
      %p37 = scmp.eq.s32.totalorder %s20, 1
      %p38 = por %p36, %p37
      %p39 = scmp.ne.s32.totalorder %s28, %s29
      %p40 = scmp.eq.s32.totalorder %s20, 0
      %p41 = por %p39, %p40
      %p42 = scmp.ne.s32.totalorder %s28, %s29
      %p43 = scmp.eq.s32.totalorder %s21, 1
      %p44 = por %p42, %p43
      %p46 = scmp.ne.s32.totalorder %s29, %s45
      %p47 = scmp.eq.s32.totalorder %s21, 0
      %p48 = por %p46, %p47
      %s50 = sadd.s32 %s49, 1
      %p53 = scmp.eq.s32.totalorder %s15, 1
      %p54 = scmp.ne.s32.totalorder %s49, %s51
      %p55 = scmp.eq.s32.totalorder %s15, 0
      %p56 = por %p54, %p55
      %p57 = scmp.ne.s32.totalorder %s49, %s51
      %p58 = scmp.eq.s32.totalorder %s20, 1
      %p59 = por %p57, %p58
      %p60 = scmp.ne.s32.totalorder %s51, %s52
      %p61 = scmp.eq.s32.totalorder %s20, 0
      %p62 = por %p60, %p61
      %p63 = scmp.ne.s32.totalorder %s51, %s52
      %p64 = scmp.eq.s32.totalorder %s21, 1
      %p65 = por %p63, %p64
      %p67 = scmp.ne.s32.totalorder %s52, %s66
      %p68 = scmp.eq.s32.totalorder %s21, 0
      %p69 = por %p67, %p68
      %s70 = ssub.s32 %s15, %s22
      %p71 = scmp.eq.s32.totalorder %s70, 0
      %s73 = sadd.s32 %s72, 1
      %s74 = scalar_select %p71, %s72, %s73
      %p77 = pneg %p71
      %p78 = scmp.eq.s32.totalorder %s15, 1
      %p79 = por %p77, %p78
      %p80 = scmp.ne.s32.totalorder %s72, %s75
      %p81 = scmp.eq.s32.totalorder %s15, 0
      %p82 = por %p80, %p81
      %p83 = scmp.ne.s32.totalorder %s72, %s75
      %p84 = scmp.eq.s32.totalorder %s20, 1
      %p85 = por %p83, %p84
      %p86 = scmp.ne.s32.totalorder %s75, %s76
      %p87 = scmp.eq.s32.totalorder %s20, 0
      %p88 = por %p86, %p87
      %p89 = scmp.ne.s32.totalorder %s75, %s76
      %p90 = scmp.eq.s32.totalorder %s21, 1
      %p91 = por %p89, %p90
      %p93 = scmp.ne.s32.totalorder %s76, %s92
      %p94 = scmp.eq.s32.totalorder %s21, 0
      %p95 = por %p93, %p94
      %p96 = scmp.le.s32.totalorder 1, %s15
      %p97 = scmp.lt.s32.totalorder %s15, 3
      %p98 = pnand %p96, %p97
      %p99 = pneg %p98
      // Predicated region
      $region9: #{tpu_custom_call.1} parent=5 // pred_check
        _
      $region10: #{tpu_custom_call.1} parent=5 // pred_check_branch
        %101 = sbr.rel (%p98) target = $region12
      $region11: #{tpu_custom_call.1} parent=5 // pred_region
        %s102 = ssub.s32 %s15, 1
        // Predicated region
        $region13: #{tpu_custom_call.1} parent=11 // pred_check
          %p103 = pneg %p62
        $region14: #{tpu_custom_call.1} parent=11 // pred_check_branch
          %105 = sbr.rel (%p103) target = $region16
        $region15: #{tpu_custom_call.1} parent=11 // pred_region
          %s107 = ssub.s32 4096, 4096
          %108 = vsyncadd [#allocation6], %s107
          %s109 = sshll.u32 [#allocation5], 4
          %s110 = int_to_ptr.vmem [resolvable:$true] %s109
          %115 = dma.hbm_to_vmem [thread:$0]  %s1, 4096, %s110, [#allocation6], 256, 256, 16
        $region16: #{tpu_custom_call.1} parent=11 // pred_fallthru
          _
      $region12: #{tpu_custom_call.1} parent=5 // pred_fallthru
        _
      %p116 = scmp.lt.s32.totalorder %s15, 2
      // Predicated region
      $region17: #{tpu_custom_call.1} parent=5 // pred_check
        %p117 = pneg %p116
      $region18: #{tpu_custom_call.1} parent=5 // pred_check_branch
        %119 = sbr.rel (%p117) target = $region20
      $region19: #{tpu_custom_call.1} parent=5 // pred_region
        // Predicated region
        $region21: #{tpu_custom_call.1} parent=19 // pred_check
          %p120 = pneg %p35
        $region22: #{tpu_custom_call.1} parent=19 // pred_check_branch
          %122 = sbr.rel (%p120) target = $region24
        $region23: #{tpu_custom_call.1} parent=19 // pred_region
          %s123 = sand.u32 %s25, 1
          %s124 = scalar_lea.sflag [#allocation3], %s123
          %s125 = sand.u32 %s25, 1
          %s126 = smul.addr %s125, 128
          %s127 = scalar_lea.vmem [#allocation2], %s126
          %s128 = smul.u32 16, %s15
          %s130 = ssub.s32 2048, 2048
          %131 = vsyncadd %s124, %s130
          %s132 = smul.addr %s128, 128
          %s133 = scalar_lea.hbm %s0, %s132
          %s134 = sshll.u32 %s127, 4
          %s135 = int_to_ptr.vmem [resolvable:$true] %s134
          %140 = dma.hbm_to_vmem [thread:$0]  %s133, 2048, %s135, %s124, 128, 128, 8
        $region24: #{tpu_custom_call.1} parent=19 // pred_fallthru
          _
      $region20: #{tpu_custom_call.1} parent=5 // pred_fallthru
        _
      %p141 = scmp.le.s32.totalorder 1, %s15
      %p142 = scmp.lt.s32.totalorder %s15, 3
      %p143 = pnand %p141, %p142
      %p144 = pneg %p143
      // Predicated region
      $region25: #{tpu_custom_call.1} parent=5 // pred_check
        _
      $region26: #{tpu_custom_call.1} parent=5 // pred_check_branch
        %146 = sbr.rel (%p143) target = $region28
      $region27: #{tpu_custom_call.1} parent=5 // pred_region
        %s147 = ssub.s32 %s15, 1
        %s148 = sand.u32 %s28, 1
        %s149 = scalar_lea.sflag [#allocation3], %s148
        %s150 = sand.u32 %s28, 1
        %s151 = smul.addr %s150, 128
        %s152 = scalar_lea.vmem [#allocation2], %s151
        // Predicated region
        $region29: #{tpu_custom_call.1} parent=27 // pred_check
          %p153 = pneg %p41
        $region30: #{tpu_custom_call.1} parent=27 // pred_check_branch
          %155 = sbr.rel (%p153) target = $region32
        $region31: #{tpu_custom_call.1} parent=27 // pred_region
          %156 = dma.done %s149, 2048
        $region32: #{tpu_custom_call.1} parent=27 // pred_fallthru
          _
        // Predicated region
        $region33: #{tpu_custom_call.1} parent=27 // pred_check
          %p157 = pneg %p62
        $region34: #{tpu_custom_call.1} parent=27 // pred_check_branch
          %159 = sbr.rel (%p157) target = $region36
        $region35: #{tpu_custom_call.1} parent=27 // pred_region
          %160 = dma.done [#allocation6], 4096
        $region36: #{tpu_custom_call.1} parent=27 // pred_fallthru
          _
        %s161 = sand.u32 %s28, 1
        %s162 = scalar_lea.sflag [#allocation3], %s161
        %s163 = sand.u32 %s28, 1
        %s164 = smul.addr %s163, 128
        %s165 = scalar_lea.vmem [#allocation2], %s164
        %p166 = pneg %p41
        %p167 = pneg %p38
        %p168 = pneg %p62
        %p169 = pneg %p59
        %p170 = pneg %p88
        %p171 = pneg %p85
        %s172 = sand.u32 %s75, 1
        %s173 = scalar_lea.sflag [#allocation4], %s172
        %s174 = sand.u32 %s75, 1
        %s175 = smul.addr %s174, 128
        %s176 = scalar_lea.vmem [#allocation7], %s175
        %s177 = smul.u32 16, %s20
        %s178 = smul.u32 16, %s20
        %v179 = vld [vmem:[%s152] sm:$0xff]
        %v180 = vld [vmem:[%s152 + $0x8] sm:$0xff]
        %v181 = vld [vmem:[%s152 + $0x10] sm:$0xff]
        %v182 = vld [vmem:[%s152 + $0x18] sm:$0xff]
        %v183 = vld [vmem:[%s152 + $0x20] sm:$0xff]
        %v184 = vld [vmem:[%s152 + $0x28] sm:$0xff]
        %v185 = vld [vmem:[%s152 + $0x30] sm:$0xff]
        %v186 = vld [vmem:[%s152 + $0x38] sm:$0xff]
        %v187 = vld [vmem:[%s152 + $0x40] sm:$0xff]
        %v188 = vld [vmem:[%s152 + $0x48] sm:$0xff]
        %v189 = vld [vmem:[%s152 + $0x50] sm:$0xff]
        %v190 = vld [vmem:[%s152 + $0x58] sm:$0xff]
        %v191 = vld [vmem:[%s152 + $0x60] sm:$0xff]
        %v192 = vld [vmem:[%s152 + $0x68] sm:$0xff]
        %v193 = vld [vmem:[%s152 + $0x70] sm:$0xff]
        %v194 = vld [vmem:[%s152 + $0x78] sm:$0xff]
        %v195 = vld [vmem:[#allocation5] sm:$0xff]
        %v196 = vld [vmem:[#allocation5 + $0x8] sm:$0xff]
        %v197 = vld [vmem:[#allocation5 + $0x10] sm:$0xff]
        %v198 = vld [vmem:[#allocation5 + $0x18] sm:$0xff]
        %v199 = vld [vmem:[#allocation5 + $0x20] sm:$0xff]
        %v200 = vld [vmem:[#allocation5 + $0x28] sm:$0xff]
        %v201 = vld [vmem:[#allocation5 + $0x30] sm:$0xff]
        %v202 = vld [vmem:[#allocation5 + $0x38] sm:$0xff]
        %v203 = vld [vmem:[#allocation5 + $0x40] sm:$0xff]
        %v204 = vld [vmem:[#allocation5 + $0x48] sm:$0xff]
        %v205 = vld [vmem:[#allocation5 + $0x50] sm:$0xff]
        %v206 = vld [vmem:[#allocation5 + $0x58] sm:$0xff]
        %v207 = vld [vmem:[#allocation5 + $0x60] sm:$0xff]
        %v208 = vld [vmem:[#allocation5 + $0x68] sm:$0xff]
        %v209 = vld [vmem:[#allocation5 + $0x70] sm:$0xff]
        %v210 = vld [vmem:[#allocation5 + $0x78] sm:$0xff]
        %v211 = vld [vmem:[#allocation5 + $0x80] sm:$0xff]
        %v212 = vld [vmem:[#allocation5 + $0x88] sm:$0xff]
        %v213 = vld [vmem:[#allocation5 + $0x90] sm:$0xff]
        %v214 = vld [vmem:[#allocation5 + $0x98] sm:$0xff]
        %v215 = vld [vmem:[#allocation5 + $0xa0] sm:$0xff]
        %v216 = vld [vmem:[#allocation5 + $0xa8] sm:$0xff]
        %v217 = vld [vmem:[#allocation5 + $0xb0] sm:$0xff]
        %v218 = vld [vmem:[#allocation5 + $0xb8] sm:$0xff]
        %v219 = vld [vmem:[#allocation5 + $0xc0] sm:$0xff]
        %v220 = vld [vmem:[#allocation5 + $0xc8] sm:$0xff]
        %v221 = vld [vmem:[#allocation5 + $0xd0] sm:$0xff]
        %v222 = vld [vmem:[#allocation5 + $0xd8] sm:$0xff]
        %v223 = vld [vmem:[#allocation5 + $0xe0] sm:$0xff]
        %v224 = vld [vmem:[#allocation5 + $0xe8] sm:$0xff]
        %v225 = vld [vmem:[#allocation5 + $0xf0] sm:$0xff]
        %v226 = vld [vmem:[#allocation5 + $0xf8] sm:$0xff]
        %227 = vmatprep.subr.mxu0 %v226
        %228 = vmatpush1.msra.mxu0 %v225
        %229 = vmatprep.subr.mxu0 %v224
        %230 = vmatpush1.msra.mxu0 %v223
        %231 = vmatprep.subr.mxu0 %v222
        %232 = vmatpush1.msra.mxu0 %v221
        %233 = vmatprep.subr.mxu0 %v220
        %234 = vmatpush1.msra.mxu0 %v219
        %235 = vmatprep.subr.mxu0 %v218
        %236 = vmatpush1.msra.mxu0 %v217
        %237 = vmatprep.subr.mxu0 %v216
        %238 = vmatpush1.msra.mxu0 %v215
        %239 = vmatprep.subr.mxu0 %v214
        %240 = vmatpush1.msra.mxu0 %v213
        %241 = vmatprep.subr.mxu0 %v212
        %242 = vmatpush1.msra.mxu0 %v211
        %243 = vmatprep.subr.mxu0 %v210
        %244 = vmatpush1.msra.mxu0 %v209
        %245 = vmatprep.subr.mxu0 %v208
        %246 = vmatpush1.msra.mxu0 %v207
        %247 = vmatprep.subr.mxu0 %v206
        %248 = vmatpush1.msra.mxu0 %v205
        %249 = vmatprep.subr.mxu0 %v204
        %250 = vmatpush1.msra.mxu0 %v203
        %251 = vmatprep.subr.mxu0 %v202
        %252 = vmatpush1.msra.mxu0 %v201
        %253 = vmatprep.subr.mxu0 %v200
        %254 = vmatpush1.msra.mxu0 %v199
        %255 = vmatprep.subr.mxu0 %v198
        %256 = vmatpush1.msra.mxu0 %v197
        %257 = vmatprep.subr.mxu0 %v196
        %258 = vmatpush1.msra.mxu0 %v195
        %259 = vmatprep.subr.mxu0 0.0
        %260 = vmatpush2.msra.mxu0 0.0
        %261 = vmatprep.subr.mxu0 0.0
        %262 = vmatpush2.msra.mxu0 0.0
        %263 = vmatprep.subr.mxu0 0.0
        %264 = vmatpush2.msra.mxu0 0.0
        %265 = vmatprep.subr.mxu0 0.0
        %266 = vmatpush2.msra.mxu0 0.0
        %267 = vmatprep.subr.mxu0 0.0
        %268 = vmatpush2.msra.mxu0 0.0
        %269 = vmatprep.subr.mxu0 0.0
        %270 = vmatpush2.msra.mxu0 0.0
        %271 = vmatprep.subr.mxu0 0.0
        %272 = vmatpush2.msra.mxu0 0.0
        %273 = vmatprep.subr.mxu0 0.0
        %274 = vmatpush2.msra.mxu0 0.0
        %275 = vmatprep.subr.mxu0 0.0
        %276 = vmatpush2.msra.mxu0 0.0
        %277 = vmatprep.subr.mxu0 0.0
        %278 = vmatpush2.msra.mxu0 0.0
        %279 = vmatprep.subr.mxu0 0.0
        %280 = vmatpush2.msra.mxu0 0.0
        %281 = vmatprep.subr.mxu0 0.0
        %282 = vmatpush2.msra.mxu0 0.0
        %283 = vmatprep.subr.mxu0 0.0
        %284 = vmatpush2.msra.mxu0 0.0
        %285 = vmatprep.subr.mxu0 0.0
        %286 = vmatpush2.msra.mxu0 0.0
        %287 = vmatprep.subr.mxu0 0.0
        %288 = vmatpush2.msra.mxu0 0.0
        %289 = vmatprep.subr.mxu0 0.0
        %290 = vmatpush2.msra.mxu0 0.0
        %291 = vmatprep.mubr.f32.mxu0 0.0
        %292 = vmatmul.mubr.f32.gmra.mxu0 %v179
        %v293 = vpop.f32.mrf.mxu0
        %v294 = vadd.f32 0.0, %v293
        %v295 = vpop.f32.mrf.mxu0
        %v296 = vadd.f32 0.0, %v295
        %297 = vmatprep.mubr.f32.mxu0 0.0
        %298 = vmatmul.mubr.f32.gmra.mxu0 %v180
        %v299 = vpop.f32.mrf.mxu0
        %v300 = vadd.f32 0.0, %v299
        %v301 = vpop.f32.mrf.mxu0
        %v302 = vadd.f32 0.0, %v301
        %303 = vmatprep.mubr.f32.mxu0 0.0
        %304 = vmatmul.mubr.f32.gmra.mxu0 %v181
        %v305 = vpop.f32.mrf.mxu0
        %v306 = vadd.f32 0.0, %v305
        %v307 = vpop.f32.mrf.mxu0
        %v308 = vadd.f32 0.0, %v307
        %309 = vmatprep.mubr.f32.mxu0 0.0
        %310 = vmatmul.mubr.f32.gmra.mxu0 %v182
        %v311 = vpop.f32.mrf.mxu0
        %v312 = vadd.f32 0.0, %v311
        %v313 = vpop.f32.mrf.mxu0
        %v314 = vadd.f32 0.0, %v313
        %315 = vmatprep.mubr.f32.mxu0 0.0
        %316 = vmatmul.mubr.f32.gmra.mxu0 %v183
        %v317 = vpop.f32.mrf.mxu0
        %v318 = vadd.f32 0.0, %v317
        %v319 = vpop.f32.mrf.mxu0
        %v320 = vadd.f32 0.0, %v319
        %321 = vmatprep.mubr.f32.mxu0 0.0
        %322 = vmatmul.mubr.f32.gmra.mxu0 %v184
        %v323 = vpop.f32.mrf.mxu0
        %v324 = vadd.f32 0.0, %v323
        %v325 = vpop.f32.mrf.mxu0
        %v326 = vadd.f32 0.0, %v325
        %327 = vmatprep.mubr.f32.mxu0 0.0
        %328 = vmatmul.mubr.f32.gmra.mxu0 %v185
        %v329 = vpop.f32.mrf.mxu0
        %v330 = vadd.f32 0.0, %v329
        %v331 = vpop.f32.mrf.mxu0
        %v332 = vadd.f32 0.0, %v331
        %333 = vmatprep.mubr.f32.mxu0 0.0
        %334 = vmatmul.mubr.f32.gmra.mxu0 %v186
        %v335 = vpop.f32.mrf.mxu0
        %v336 = vadd.f32 0.0, %v335
        %v337 = vpop.f32.mrf.mxu0
        %v338 = vadd.f32 0.0, %v337
        %339 = vmatprep.mubr.f32.mxu0 0.0
        %340 = vmatmul.mubr.f32.gmra.mxu0 %v187
        %v341 = vpop.f32.mrf.mxu0
        %v342 = vadd.f32 0.0, %v341
        %v343 = vpop.f32.mrf.mxu0
        %v344 = vadd.f32 0.0, %v343
        %345 = vmatprep.mubr.f32.mxu0 0.0
        %346 = vmatmul.mubr.f32.gmra.mxu0 %v188
        %v347 = vpop.f32.mrf.mxu0
        %v348 = vadd.f32 0.0, %v347
        %v349 = vpop.f32.mrf.mxu0
        %v350 = vadd.f32 0.0, %v349
        %351 = vmatprep.mubr.f32.mxu0 0.0
        %352 = vmatmul.mubr.f32.gmra.mxu0 %v189
        %v353 = vpop.f32.mrf.mxu0
        %v354 = vadd.f32 0.0, %v353
        %v355 = vpop.f32.mrf.mxu0
        %v356 = vadd.f32 0.0, %v355
        %357 = vmatprep.mubr.f32.mxu0 0.0
        %358 = vmatmul.mubr.f32.gmra.mxu0 %v190
        %v359 = vpop.f32.mrf.mxu0
        %v360 = vadd.f32 0.0, %v359
        %v361 = vpop.f32.mrf.mxu0
        %v362 = vadd.f32 0.0, %v361
        %363 = vmatprep.mubr.f32.mxu0 0.0
        %364 = vmatmul.mubr.f32.gmra.mxu0 %v191
        %v365 = vpop.f32.mrf.mxu0
        %v366 = vadd.f32 0.0, %v365
        %v367 = vpop.f32.mrf.mxu0
        %v368 = vadd.f32 0.0, %v367
        %369 = vmatprep.mubr.f32.mxu0 0.0
        %370 = vmatmul.mubr.f32.gmra.mxu0 %v192
        %v371 = vpop.f32.mrf.mxu0
        %v372 = vadd.f32 0.0, %v371
        %v373 = vpop.f32.mrf.mxu0
        %v374 = vadd.f32 0.0, %v373
        %375 = vmatprep.mubr.f32.mxu0 0.0
        %376 = vmatmul.mubr.f32.gmra.mxu0 %v193
        %v377 = vpop.f32.mrf.mxu0
        %v378 = vadd.f32 0.0, %v377
        %v379 = vpop.f32.mrf.mxu0
        %v380 = vadd.f32 0.0, %v379
        %381 = vmatprep.mubr.f32.mxu0 0.0
        %382 = vmatmul.mubr.f32.gmra.mxu0 %v194
        %v383 = vpop.f32.mrf.mxu0
        %v384 = vadd.f32 0.0, %v383
        %v385 = vpop.f32.mrf.mxu0
        %v386 = vadd.f32 0.0, %v385
        %387 = vdwg.mxu0
        %v388 = vand.u32 2147483647, %v294
        %vm389 = vcmp.le.f32.partialorder %v388, 0.7853982
        %vm390 = vcmp.lt.s32.totalorder %v294, 0
        %v391 = vand.u32 %v294, 2139095040
        %v392 = vshrl.u32 %v391, 23
        %v393 = vsub.s32 %v392, 127
        %v394 = vand.u32 2147483647, %v294
        %v395 = vand.u32 %v394, 8388607
        %v396 = vor.u32 %v395, 8388608
        %v397 = vsub.s32 0, %v396
        %v398 = vadd.s32 %v393, 1
        %vm399 = vcmp.gt.s32.totalorder %v398, 0
        %v400 = vsel %vm399, %v398, 0
        %v401 = vshrl.u32 %v400, 5
        %v402 = vand.u32 %v400, 31
        %v403 = vsub.s32 32, %v402
        %v404 = vshrl.u32 683565275, %v403
        %v405 = vshll.u32 683565275, %v402
        %v406 = vshrl.u32 2475754826, %v403
        %v407 = vor.u32 %v405, %v406
        %v408 = vshll.u32 2475754826, %v402
        %v409 = vshrl.u32 2131351028, %v403
        %v410 = vor.u32 %v408, %v409
        %v411 = vshll.u32 2131351028, %v402
        %v412 = vshrl.u32 2102212464, %v403
        %v413 = vor.u32 %v411, %v412
        %v414 = vshll.u32 2102212464, %v402
        %v415 = vshrl.u32 920167782, %v403
        %v416 = vor.u32 %v414, %v415
        %v417 = vshll.u32 920167782, %v402
        %v418 = vshrl.u32 1326507024, %v403
        %v419 = vor.u32 %v417, %v418
        %vm420 = vcmp.lt.s32.totalorder %v401, 1
        %vm421 = vcmp.lt.s32.totalorder %v401, 2
        %vm422 = vcmp.lt.s32.totalorder %v401, 3
        %vm423 = vcmp.lt.s32.totalorder %v401, 4
        %v424 = vsel %vm420, %v404, %v407
        %v425 = vsel %vm423, %v413, 2102212464
        %v426 = vsel %vm422, %v410, %v425
        %v427 = vsel %vm421, %v424, %v426
        %v428 = vsel %vm420, %v407, %v410
        %v429 = vsel %vm423, %v416, 920167782
        %v430 = vsel %vm422, %v413, %v429
        %v431 = vsel %vm421, %v428, %v430
        %v432 = vsel %vm420, %v410, %v413
        %v433 = vsel %vm423, %v419, 1326507024
        %v434 = vsel %vm422, %v416, %v433
        %v435 = vsel %vm421, %v432, %v434
        %v436 = vshll.u32 %v396, 8
        %v437 = vmul.u32.u64.compose %v436, %v435
        %v438 = vextract.low.u32 %v437
        %v439 = vextract.high.u32 %v437
        %v440 = vmul.u32.u64.compose %v436, %v431
        %v441 = vextract.low.u32 %v440
        %v442 = vextract.high.u32 %v440
        %v443 = vmul.u32 %v436, %v427
        %v444 = vadd.s32 %v439, %v441
        %vm445 = vc.u32 %v439, %v441
        %v446 = vadd.s32 %v442, 1
        %v447 = vsel %vm445, %v446, %v442
        %v448 = vadd.s32 %v443, %v447
        %v449 = vadd.s32 %v448, 536870912
        %v450 = vshrl.u32 %v449, 30
        %v451 = vshll.u32 %v450, 30
        %v452 = vsub.s32 %v448, %v451
        %vm453 = vcmp.lt.s32.totalorder %v452, 0
        %v454 = vsub.s32 0, %v452
        %v455 = vsel %vm453, %v454, %v452
        %v456 = vclz %v455
        %v457 = vsub.s32 %v456, 2
        %vm458 = vcmp.gt.s32.totalorder 0, %v457
        %v459 = vsel %vm458, 0, %v457
        %v460 = vsub.s32 32, %v459
        %v461 = vshll.u32 %v452, %v459
        %v462 = vshrl.u32 %v444, %v460
        %v463 = vor.u32 %v461, %v462
        %v464 = vsub.s32 4294967266, %v459
        %v465 = vadd.s32 %v464, 127
        %v466 = vshll.u32 %v465, 23
        %v467 = vor.u32 4788187, %v466
        %v468 = vand.u32 2147483647, %v467
        %v470 = vcvt.s32.f32 %v463
        %v471 = vmul.f32 %v470, %v468
        %v472 = vxor.u32 %v471, 2147483648
        %v473 = vsel %vm390, %v472, %v471
        %v474 = vsub.s32 4, %v450
        %v475 = vsel %vm390, %v474, %v450
        %v476 = vsel %vm389, %v294, %v473
        %v477 = vsel %vm389, 0, %v475
        %v478 = vcosq.f32.pop %v476
        %v479 = vsinq.f32.pop %v476
        %vm480 = vweird.f32 %v294
        %v481 = vadd.s32 %v477, 3
        %v482 = vand.u32 %v481, 3
        %vm483 = vcmp.lt.s32.totalorder %v482, 2
        %vm484 = vcmp.eq.s32.totalorder %v482, 0
        %v485 = vxor.u32 %v479, 2147483648
        %v486 = vsel %vm484, %v478, %v485
        %vm487 = vcmp.eq.s32.totalorder %v482, 2
        %v488 = vxor.u32 %v478, 2147483648
        %v489 = vsel %vm487, %v488, %v479
        %v490 = vsel %vm483, %v486, %v489
        %v491 = vsel %vm480, nan, %v490
        %v492 = vand.u32 2147483647, %v300
        %vm493 = vcmp.le.f32.partialorder %v492, 0.7853982
        %vm494 = vcmp.lt.s32.totalorder %v300, 0
        %v495 = vand.u32 %v300, 2139095040
        %v496 = vshrl.u32 %v495, 23
        %v497 = vsub.s32 %v496, 127
        %v498 = vand.u32 2147483647, %v300
        %v499 = vand.u32 %v498, 8388607
        %v500 = vor.u32 %v499, 8388608
        %v501 = vsub.s32 0, %v500
        %v502 = vadd.s32 %v497, 1
        %vm503 = vcmp.gt.s32.totalorder %v502, 0
        %v504 = vsel %vm503, %v502, 0
        %v505 = vshrl.u32 %v504, 5
        %v506 = vand.u32 %v504, 31
        %v507 = vsub.s32 32, %v506
        %v508 = vshrl.u32 683565275, %v507
        %v509 = vshll.u32 683565275, %v506
        %v510 = vshrl.u32 2475754826, %v507
        %v511 = vor.u32 %v509, %v510
        %v512 = vshll.u32 2475754826, %v506
        %v513 = vshrl.u32 2131351028, %v507
        %v514 = vor.u32 %v512, %v513
        %v515 = vshll.u32 2131351028, %v506
        %v516 = vshrl.u32 2102212464, %v507
        %v517 = vor.u32 %v515, %v516
        %v518 = vshll.u32 2102212464, %v506
        %v519 = vshrl.u32 920167782, %v507
        %v520 = vor.u32 %v518, %v519
        %v521 = vshll.u32 920167782, %v506
        %v522 = vshrl.u32 1326507024, %v507
        %v523 = vor.u32 %v521, %v522
        %vm524 = vcmp.lt.s32.totalorder %v505, 1
        %vm525 = vcmp.lt.s32.totalorder %v505, 2
        %vm526 = vcmp.lt.s32.totalorder %v505, 3
        %vm527 = vcmp.lt.s32.totalorder %v505, 4
        %v528 = vsel %vm524, %v508, %v511
        %v529 = vsel %vm527, %v517, 2102212464
        %v530 = vsel %vm526, %v514, %v529
        %v531 = vsel %vm525, %v528, %v530
        %v532 = vsel %vm524, %v511, %v514
        %v533 = vsel %vm527, %v520, 920167782
        %v534 = vsel %vm526, %v517, %v533
        %v535 = vsel %vm525, %v532, %v534
        %v536 = vsel %vm524, %v514, %v517
        %v537 = vsel %vm527, %v523, 1326507024
        %v538 = vsel %vm526, %v520, %v537
        %v539 = vsel %vm525, %v536, %v538
        %v540 = vshll.u32 %v500, 8
        %v541 = vmul.u32.u64.compose %v540, %v539
        %v542 = vextract.low.u32 %v541
        %v543 = vextract.high.u32 %v541
        %v544 = vmul.u32.u64.compose %v540, %v535
        %v545 = vextract.low.u32 %v544
        %v546 = vextract.high.u32 %v544
        %v547 = vmul.u32 %v540, %v531
        %v548 = vadd.s32 %v543, %v545
        %vm549 = vc.u32 %v543, %v545
        %v550 = vadd.s32 %v546, 1
        %v551 = vsel %vm549, %v550, %v546
        %v552 = vadd.s32 %v547, %v551
        %v553 = vadd.s32 %v552, 536870912
        %v554 = vshrl.u32 %v553, 30
        %v555 = vshll.u32 %v554, 30
        %v556 = vsub.s32 %v552, %v555
        %vm557 = vcmp.lt.s32.totalorder %v556, 0
        %v558 = vsub.s32 0, %v556
        %v559 = vsel %vm557, %v558, %v556
        %v560 = vclz %v559
        %v561 = vsub.s32 %v560, 2
        %vm562 = vcmp.gt.s32.totalorder 0, %v561
        %v563 = vsel %vm562, 0, %v561
        %v564 = vsub.s32 32, %v563
        %v565 = vshll.u32 %v556, %v563
        %v566 = vshrl.u32 %v548, %v564
        %v567 = vor.u32 %v565, %v566
        %v568 = vsub.s32 4294967266, %v563
        %v569 = vadd.s32 %v568, 127
        %v570 = vshll.u32 %v569, 23
        %v571 = vor.u32 4788187, %v570
        %v572 = vand.u32 2147483647, %v571
        %v574 = vcvt.s32.f32 %v567
        %v575 = vmul.f32 %v574, %v572
        %v576 = vxor.u32 %v575, 2147483648
        %v577 = vsel %vm494, %v576, %v575
        %v578 = vsub.s32 4, %v554
        %v579 = vsel %vm494, %v578, %v554
        %v580 = vsel %vm493, %v300, %v577
        %v581 = vsel %vm493, 0, %v579
        %v582 = vcosq.f32.pop %v580
        %v583 = vsinq.f32.pop %v580
        %vm584 = vweird.f32 %v300
        %v585 = vadd.s32 %v581, 3
        %v586 = vand.u32 %v585, 3
        %vm587 = vcmp.lt.s32.totalorder %v586, 2
        %vm588 = vcmp.eq.s32.totalorder %v586, 0
        %v589 = vxor.u32 %v583, 2147483648
        %v590 = vsel %vm588, %v582, %v589
        %vm591 = vcmp.eq.s32.totalorder %v586, 2
        %v592 = vxor.u32 %v582, 2147483648
        %v593 = vsel %vm591, %v592, %v583
        %v594 = vsel %vm587, %v590, %v593
        %v595 = vsel %vm584, nan, %v594
        %v596 = vand.u32 2147483647, %v306
        %vm597 = vcmp.le.f32.partialorder %v596, 0.7853982
        %vm598 = vcmp.lt.s32.totalorder %v306, 0
        %v599 = vand.u32 %v306, 2139095040
        %v600 = vshrl.u32 %v599, 23
        %v601 = vsub.s32 %v600, 127
        %v602 = vand.u32 2147483647, %v306
        %v603 = vand.u32 %v602, 8388607
        %v604 = vor.u32 %v603, 8388608
        %v605 = vsub.s32 0, %v604
        %v606 = vadd.s32 %v601, 1
        %vm607 = vcmp.gt.s32.totalorder %v606, 0
        %v608 = vsel %vm607, %v606, 0
        %v609 = vshrl.u32 %v608, 5
        %v610 = vand.u32 %v608, 31
        %v611 = vsub.s32 32, %v610
        %v612 = vshrl.u32 683565275, %v611
        %v613 = vshll.u32 683565275, %v610
        %v614 = vshrl.u32 2475754826, %v611
        %v615 = vor.u32 %v613, %v614
        %v616 = vshll.u32 2475754826, %v610
        %v617 = vshrl.u32 2131351028, %v611
        %v618 = vor.u32 %v616, %v617
        %v619 = vshll.u32 2131351028, %v610
        %v620 = vshrl.u32 2102212464, %v611
        %v621 = vor.u32 %v619, %v620
        %v622 = vshll.u32 2102212464, %v610
        %v623 = vshrl.u32 920167782, %v611
        %v624 = vor.u32 %v622, %v623
        %v625 = vshll.u32 920167782, %v610
        %v626 = vshrl.u32 1326507024, %v611
        %v627 = vor.u32 %v625, %v626
        %vm628 = vcmp.lt.s32.totalorder %v609, 1
        %vm629 = vcmp.lt.s32.totalorder %v609, 2
        %vm630 = vcmp.lt.s32.totalorder %v609, 3
        %vm631 = vcmp.lt.s32.totalorder %v609, 4
        %v632 = vsel %vm628, %v612, %v615
        %v633 = vsel %vm631, %v621, 2102212464
        %v634 = vsel %vm630, %v618, %v633
        %v635 = vsel %vm629, %v632, %v634
        %v636 = vsel %vm628, %v615, %v618
        %v637 = vsel %vm631, %v624, 920167782
        %v638 = vsel %vm630, %v621, %v637
        %v639 = vsel %vm629, %v636, %v638
        %v640 = vsel %vm628, %v618, %v621
        %v641 = vsel %vm631, %v627, 1326507024
        %v642 = vsel %vm630, %v624, %v641
        %v643 = vsel %vm629, %v640, %v642
        %v644 = vshll.u32 %v604, 8
        %v645 = vmul.u32.u64.compose %v644, %v643
        %v646 = vextract.low.u32 %v645
        %v647 = vextract.high.u32 %v645
        %v648 = vmul.u32.u64.compose %v644, %v639
        %v649 = vextract.low.u32 %v648
        %v650 = vextract.high.u32 %v648
        %v651 = vmul.u32 %v644, %v635
        %v652 = vadd.s32 %v647, %v649
        %vm653 = vc.u32 %v647, %v649
        %v654 = vadd.s32 %v650, 1
        %v655 = vsel %vm653, %v654, %v650
        %v656 = vadd.s32 %v651, %v655
        %v657 = vadd.s32 %v656, 536870912
        %v658 = vshrl.u32 %v657, 30
        %v659 = vshll.u32 %v658, 30
        %v660 = vsub.s32 %v656, %v659
        %vm661 = vcmp.lt.s32.totalorder %v660, 0
        %v662 = vsub.s32 0, %v660
        %v663 = vsel %vm661, %v662, %v660
        %v664 = vclz %v663
        %v665 = vsub.s32 %v664, 2
        %vm666 = vcmp.gt.s32.totalorder 0, %v665
        %v667 = vsel %vm666, 0, %v665
        %v668 = vsub.s32 32, %v667
        %v669 = vshll.u32 %v660, %v667
        %v670 = vshrl.u32 %v652, %v668
        %v671 = vor.u32 %v669, %v670
        %v672 = vsub.s32 4294967266, %v667
        %v673 = vadd.s32 %v672, 127
        %v674 = vshll.u32 %v673, 23
        %v675 = vor.u32 4788187, %v674
        %v676 = vand.u32 2147483647, %v675
        %v678 = vcvt.s32.f32 %v671
        %v679 = vmul.f32 %v678, %v676
        %v680 = vxor.u32 %v679, 2147483648
        %v681 = vsel %vm598, %v680, %v679
        %v682 = vsub.s32 4, %v658
        %v683 = vsel %vm598, %v682, %v658
        %v684 = vsel %vm597, %v306, %v681
        %v685 = vsel %vm597, 0, %v683
        %v686 = vcosq.f32.pop %v684
        %v687 = vsinq.f32.pop %v684
        %vm688 = vweird.f32 %v306
        %v689 = vadd.s32 %v685, 3
        %v690 = vand.u32 %v689, 3
        %vm691 = vcmp.lt.s32.totalorder %v690, 2
        %vm692 = vcmp.eq.s32.totalorder %v690, 0
        %v693 = vxor.u32 %v687, 2147483648
        %v694 = vsel %vm692, %v686, %v693
        %vm695 = vcmp.eq.s32.totalorder %v690, 2
        %v696 = vxor.u32 %v686, 2147483648
        %v697 = vsel %vm695, %v696, %v687
        %v698 = vsel %vm691, %v694, %v697
        %v699 = vsel %vm688, nan, %v698
        %v700 = vand.u32 2147483647, %v312
        %vm701 = vcmp.le.f32.partialorder %v700, 0.7853982
        %vm702 = vcmp.lt.s32.totalorder %v312, 0
        %v703 = vand.u32 %v312, 2139095040
        %v704 = vshrl.u32 %v703, 23
        %v705 = vsub.s32 %v704, 127
        %v706 = vand.u32 2147483647, %v312
        %v707 = vand.u32 %v706, 8388607
        %v708 = vor.u32 %v707, 8388608
        %v709 = vsub.s32 0, %v708
        %v710 = vadd.s32 %v705, 1
        %vm711 = vcmp.gt.s32.totalorder %v710, 0
        %v712 = vsel %vm711, %v710, 0
        %v713 = vshrl.u32 %v712, 5
        %v714 = vand.u32 %v712, 31
        %v715 = vsub.s32 32, %v714
        %v716 = vshrl.u32 683565275, %v715
        %v717 = vshll.u32 683565275, %v714
        %v718 = vshrl.u32 2475754826, %v715
        %v719 = vor.u32 %v717, %v718
        %v720 = vshll.u32 2475754826, %v714
        %v721 = vshrl.u32 2131351028, %v715
        %v722 = vor.u32 %v720, %v721
        %v723 = vshll.u32 2131351028, %v714
        %v724 = vshrl.u32 2102212464, %v715
        %v725 = vor.u32 %v723, %v724
        %v726 = vshll.u32 2102212464, %v714
        %v727 = vshrl.u32 920167782, %v715
        %v728 = vor.u32 %v726, %v727
        %v729 = vshll.u32 920167782, %v714
        %v730 = vshrl.u32 1326507024, %v715
        %v731 = vor.u32 %v729, %v730
        %vm732 = vcmp.lt.s32.totalorder %v713, 1
        %vm733 = vcmp.lt.s32.totalorder %v713, 2
        %vm734 = vcmp.lt.s32.totalorder %v713, 3
        %vm735 = vcmp.lt.s32.totalorder %v713, 4
        %v736 = vsel %vm732, %v716, %v719
        %v737 = vsel %vm735, %v725, 2102212464
        %v738 = vsel %vm734, %v722, %v737
        %v739 = vsel %vm733, %v736, %v738
        %v740 = vsel %vm732, %v719, %v722
        %v741 = vsel %vm735, %v728, 920167782
        %v742 = vsel %vm734, %v725, %v741
        %v743 = vsel %vm733, %v740, %v742
        %v744 = vsel %vm732, %v722, %v725
        %v745 = vsel %vm735, %v731, 1326507024
        %v746 = vsel %vm734, %v728, %v745
        %v747 = vsel %vm733, %v744, %v746
        %v748 = vshll.u32 %v708, 8
        %v749 = vmul.u32.u64.compose %v748, %v747
        %v750 = vextract.low.u32 %v749
        %v751 = vextract.high.u32 %v749
        %v752 = vmul.u32.u64.compose %v748, %v743
        %v753 = vextract.low.u32 %v752
        %v754 = vextract.high.u32 %v752
        %v755 = vmul.u32 %v748, %v739
        %v756 = vadd.s32 %v751, %v753
        %vm757 = vc.u32 %v751, %v753
        %v758 = vadd.s32 %v754, 1
        %v759 = vsel %vm757, %v758, %v754
        %v760 = vadd.s32 %v755, %v759
        %v761 = vadd.s32 %v760, 536870912
        %v762 = vshrl.u32 %v761, 30
        %v763 = vshll.u32 %v762, 30
        %v764 = vsub.s32 %v760, %v763
        %vm765 = vcmp.lt.s32.totalorder %v764, 0
        %v766 = vsub.s32 0, %v764
        %v767 = vsel %vm765, %v766, %v764
        %v768 = vclz %v767
        %v769 = vsub.s32 %v768, 2
        %vm770 = vcmp.gt.s32.totalorder 0, %v769
        %v771 = vsel %vm770, 0, %v769
        %v772 = vsub.s32 32, %v771
        %v773 = vshll.u32 %v764, %v771
        %v774 = vshrl.u32 %v756, %v772
        %v775 = vor.u32 %v773, %v774
        %v776 = vsub.s32 4294967266, %v771
        %v777 = vadd.s32 %v776, 127
        %v778 = vshll.u32 %v777, 23
        %v779 = vor.u32 4788187, %v778
        %v780 = vand.u32 2147483647, %v779
        %v782 = vcvt.s32.f32 %v775
        %v783 = vmul.f32 %v782, %v780
        %v784 = vxor.u32 %v783, 2147483648
        %v785 = vsel %vm702, %v784, %v783
        %v786 = vsub.s32 4, %v762
        %v787 = vsel %vm702, %v786, %v762
        %v788 = vsel %vm701, %v312, %v785
        %v789 = vsel %vm701, 0, %v787
        %v790 = vcosq.f32.pop %v788
        %v791 = vsinq.f32.pop %v788
        %vm792 = vweird.f32 %v312
        %v793 = vadd.s32 %v789, 3
        %v794 = vand.u32 %v793, 3
        %vm795 = vcmp.lt.s32.totalorder %v794, 2
        %vm796 = vcmp.eq.s32.totalorder %v794, 0
        %v797 = vxor.u32 %v791, 2147483648
        %v798 = vsel %vm796, %v790, %v797
        %vm799 = vcmp.eq.s32.totalorder %v794, 2
        %v800 = vxor.u32 %v790, 2147483648
        %v801 = vsel %vm799, %v800, %v791
        %v802 = vsel %vm795, %v798, %v801
        %v803 = vsel %vm792, nan, %v802
        %v804 = vand.u32 2147483647, %v318
        %vm805 = vcmp.le.f32.partialorder %v804, 0.7853982
        %vm806 = vcmp.lt.s32.totalorder %v318, 0
        %v807 = vand.u32 %v318, 2139095040
        %v808 = vshrl.u32 %v807, 23
        %v809 = vsub.s32 %v808, 127
        %v810 = vand.u32 2147483647, %v318
        %v811 = vand.u32 %v810, 8388607
        %v812 = vor.u32 %v811, 8388608
        %v813 = vsub.s32 0, %v812
        %v814 = vadd.s32 %v809, 1
        %vm815 = vcmp.gt.s32.totalorder %v814, 0
        %v816 = vsel %vm815, %v814, 0
        %v817 = vshrl.u32 %v816, 5
        %v818 = vand.u32 %v816, 31
        %v819 = vsub.s32 32, %v818
        %v820 = vshrl.u32 683565275, %v819
        %v821 = vshll.u32 683565275, %v818
        %v822 = vshrl.u32 2475754826, %v819
        %v823 = vor.u32 %v821, %v822
        %v824 = vshll.u32 2475754826, %v818
        %v825 = vshrl.u32 2131351028, %v819
        %v826 = vor.u32 %v824, %v825
        %v827 = vshll.u32 2131351028, %v818
        %v828 = vshrl.u32 2102212464, %v819
        %v829 = vor.u32 %v827, %v828
        %v830 = vshll.u32 2102212464, %v818
        %v831 = vshrl.u32 920167782, %v819
        %v832 = vor.u32 %v830, %v831
        %v833 = vshll.u32 920167782, %v818
        %v834 = vshrl.u32 1326507024, %v819
        %v835 = vor.u32 %v833, %v834
        %vm836 = vcmp.lt.s32.totalorder %v817, 1
        %vm837 = vcmp.lt.s32.totalorder %v817, 2
        %vm838 = vcmp.lt.s32.totalorder %v817, 3
        %vm839 = vcmp.lt.s32.totalorder %v817, 4
        %v840 = vsel %vm836, %v820, %v823
        %v841 = vsel %vm839, %v829, 2102212464
        %v842 = vsel %vm838, %v826, %v841
        %v843 = vsel %vm837, %v840, %v842
        %v844 = vsel %vm836, %v823, %v826
        %v845 = vsel %vm839, %v832, 920167782
        %v846 = vsel %vm838, %v829, %v845
        %v847 = vsel %vm837, %v844, %v846
        %v848 = vsel %vm836, %v826, %v829
        %v849 = vsel %vm839, %v835, 1326507024
        %v850 = vsel %vm838, %v832, %v849
        %v851 = vsel %vm837, %v848, %v850
        %v852 = vshll.u32 %v812, 8
        %v853 = vmul.u32.u64.compose %v852, %v851
        %v854 = vextract.low.u32 %v853
        %v855 = vextract.high.u32 %v853
        %v856 = vmul.u32.u64.compose %v852, %v847
        %v857 = vextract.low.u32 %v856
        %v858 = vextract.high.u32 %v856
        %v859 = vmul.u32 %v852, %v843
        %v860 = vadd.s32 %v855, %v857
        %vm861 = vc.u32 %v855, %v857
        %v862 = vadd.s32 %v858, 1
        %v863 = vsel %vm861, %v862, %v858
        %v864 = vadd.s32 %v859, %v863
        %v865 = vadd.s32 %v864, 536870912
        %v866 = vshrl.u32 %v865, 30
        %v867 = vshll.u32 %v866, 30
        %v868 = vsub.s32 %v864, %v867
        %vm869 = vcmp.lt.s32.totalorder %v868, 0
        %v870 = vsub.s32 0, %v868
        %v871 = vsel %vm869, %v870, %v868
        %v872 = vclz %v871
        %v873 = vsub.s32 %v872, 2
        %vm874 = vcmp.gt.s32.totalorder 0, %v873
        %v875 = vsel %vm874, 0, %v873
        %v876 = vsub.s32 32, %v875
        %v877 = vshll.u32 %v868, %v875
        %v878 = vshrl.u32 %v860, %v876
        %v879 = vor.u32 %v877, %v878
        %v880 = vsub.s32 4294967266, %v875
        %v881 = vadd.s32 %v880, 127
        %v882 = vshll.u32 %v881, 23
        %v883 = vor.u32 4788187, %v882
        %v884 = vand.u32 2147483647, %v883
        %v886 = vcvt.s32.f32 %v879
        %v887 = vmul.f32 %v886, %v884
        %v888 = vxor.u32 %v887, 2147483648
        %v889 = vsel %vm806, %v888, %v887
        %v890 = vsub.s32 4, %v866
        %v891 = vsel %vm806, %v890, %v866
        %v892 = vsel %vm805, %v318, %v889
        %v893 = vsel %vm805, 0, %v891
        %v894 = vcosq.f32.pop %v892
        %v895 = vsinq.f32.pop %v892
        %vm896 = vweird.f32 %v318
        %v897 = vadd.s32 %v893, 3
        %v898 = vand.u32 %v897, 3
        %vm899 = vcmp.lt.s32.totalorder %v898, 2
        %vm900 = vcmp.eq.s32.totalorder %v898, 0
        %v901 = vxor.u32 %v895, 2147483648
        %v902 = vsel %vm900, %v894, %v901
        %vm903 = vcmp.eq.s32.totalorder %v898, 2
        %v904 = vxor.u32 %v894, 2147483648
        %v905 = vsel %vm903, %v904, %v895
        %v906 = vsel %vm899, %v902, %v905
        %v907 = vsel %vm896, nan, %v906
        %v908 = vand.u32 2147483647, %v324
        %vm909 = vcmp.le.f32.partialorder %v908, 0.7853982
        %vm910 = vcmp.lt.s32.totalorder %v324, 0
        %v911 = vand.u32 %v324, 2139095040
        %v912 = vshrl.u32 %v911, 23
        %v913 = vsub.s32 %v912, 127
        %v914 = vand.u32 2147483647, %v324
        %v915 = vand.u32 %v914, 8388607
        %v916 = vor.u32 %v915, 8388608
        %v917 = vsub.s32 0, %v916
        %v918 = vadd.s32 %v913, 1
        %vm919 = vcmp.gt.s32.totalorder %v918, 0
        %v920 = vsel %vm919, %v918, 0
        %v921 = vshrl.u32 %v920, 5
        %v922 = vand.u32 %v920, 31
        %v923 = vsub.s32 32, %v922
        %v924 = vshrl.u32 683565275, %v923
        %v925 = vshll.u32 683565275, %v922
        %v926 = vshrl.u32 2475754826, %v923
        %v927 = vor.u32 %v925, %v926
        %v928 = vshll.u32 2475754826, %v922
        %v929 = vshrl.u32 2131351028, %v923
        %v930 = vor.u32 %v928, %v929
        %v931 = vshll.u32 2131351028, %v922
        %v932 = vshrl.u32 2102212464, %v923
        %v933 = vor.u32 %v931, %v932
        %v934 = vshll.u32 2102212464, %v922
        %v935 = vshrl.u32 920167782, %v923
        %v936 = vor.u32 %v934, %v935
        %v937 = vshll.u32 920167782, %v922
        %v938 = vshrl.u32 1326507024, %v923
        %v939 = vor.u32 %v937, %v938
        %vm940 = vcmp.lt.s32.totalorder %v921, 1
        %vm941 = vcmp.lt.s32.totalorder %v921, 2
        %vm942 = vcmp.lt.s32.totalorder %v921, 3
        %vm943 = vcmp.lt.s32.totalorder %v921, 4
        %v944 = vsel %vm940, %v924, %v927
        %v945 = vsel %vm943, %v933, 2102212464
        %v946 = vsel %vm942, %v930, %v945
        %v947 = vsel %vm941, %v944, %v946
        %v948 = vsel %vm940, %v927, %v930
        %v949 = vsel %vm943, %v936, 920167782
        %v950 = vsel %vm942, %v933, %v949
        %v951 = vsel %vm941, %v948, %v950
        %v952 = vsel %vm940, %v930, %v933
        %v953 = vsel %vm943, %v939, 1326507024
        %v954 = vsel %vm942, %v936, %v953
        %v955 = vsel %vm941, %v952, %v954
        %v956 = vshll.u32 %v916, 8
        %v957 = vmul.u32.u64.compose %v956, %v955
        %v958 = vextract.low.u32 %v957
        %v959 = vextract.high.u32 %v957
        %v960 = vmul.u32.u64.compose %v956, %v951
        %v961 = vextract.low.u32 %v960
        %v962 = vextract.high.u32 %v960
        %v963 = vmul.u32 %v956, %v947
        %v964 = vadd.s32 %v959, %v961
        %vm965 = vc.u32 %v959, %v961
        %v966 = vadd.s32 %v962, 1
        %v967 = vsel %vm965, %v966, %v962
        %v968 = vadd.s32 %v963, %v967
        %v969 = vadd.s32 %v968, 536870912
        %v970 = vshrl.u32 %v969, 30
        %v971 = vshll.u32 %v970, 30
        %v972 = vsub.s32 %v968, %v971
        %vm973 = vcmp.lt.s32.totalorder %v972, 0
        %v974 = vsub.s32 0, %v972
        %v975 = vsel %vm973, %v974, %v972
        %v976 = vclz %v975
        %v977 = vsub.s32 %v976, 2
        %vm978 = vcmp.gt.s32.totalorder 0, %v977
        %v979 = vsel %vm978, 0, %v977
        %v980 = vsub.s32 32, %v979
        %v981 = vshll.u32 %v972, %v979
        %v982 = vshrl.u32 %v964, %v980
        %v983 = vor.u32 %v981, %v982
        %v984 = vsub.s32 4294967266, %v979
        %v985 = vadd.s32 %v984, 127
        %v986 = vshll.u32 %v985, 23
        %v987 = vor.u32 4788187, %v986
        %v988 = vand.u32 2147483647, %v987
        %v990 = vcvt.s32.f32 %v983
        %v991 = vmul.f32 %v990, %v988
        %v992 = vxor.u32 %v991, 2147483648
        %v993 = vsel %vm910, %v992, %v991
        %v994 = vsub.s32 4, %v970
        %v995 = vsel %vm910, %v994, %v970
        %v996 = vsel %vm909, %v324, %v993
        %v997 = vsel %vm909, 0, %v995
        %v998 = vcosq.f32.pop %v996
        %v999 = vsinq.f32.pop %v996
        %vm1000 = vweird.f32 %v324
        %v1001 = vadd.s32 %v997, 3
        %v1002 = vand.u32 %v1001, 3
        %vm1003 = vcmp.lt.s32.totalorder %v1002, 2
        %vm1004 = vcmp.eq.s32.totalorder %v1002, 0
        %v1005 = vxor.u32 %v999, 2147483648
        %v1006 = vsel %vm1004, %v998, %v1005
        %vm1007 = vcmp.eq.s32.totalorder %v1002, 2
        %v1008 = vxor.u32 %v998, 2147483648
        %v1009 = vsel %vm1007, %v1008, %v999
        %v1010 = vsel %vm1003, %v1006, %v1009
        %v1011 = vsel %vm1000, nan, %v1010
        %v1012 = vand.u32 2147483647, %v330
        %vm1013 = vcmp.le.f32.partialorder %v1012, 0.7853982
        %vm1014 = vcmp.lt.s32.totalorder %v330, 0
        %v1015 = vand.u32 %v330, 2139095040
        %v1016 = vshrl.u32 %v1015, 23
        %v1017 = vsub.s32 %v1016, 127
        %v1018 = vand.u32 2147483647, %v330
        %v1019 = vand.u32 %v1018, 8388607
        %v1020 = vor.u32 %v1019, 8388608
        %v1021 = vsub.s32 0, %v1020
        %v1022 = vadd.s32 %v1017, 1
        %vm1023 = vcmp.gt.s32.totalorder %v1022, 0
        %v1024 = vsel %vm1023, %v1022, 0
        %v1025 = vshrl.u32 %v1024, 5
        %v1026 = vand.u32 %v1024, 31
        %v1027 = vsub.s32 32, %v1026
        %v1028 = vshrl.u32 683565275, %v1027
        %v1029 = vshll.u32 683565275, %v1026
        %v1030 = vshrl.u32 2475754826, %v1027
        %v1031 = vor.u32 %v1029, %v1030
        %v1032 = vshll.u32 2475754826, %v1026
        %v1033 = vshrl.u32 2131351028, %v1027
        %v1034 = vor.u32 %v1032, %v1033
        %v1035 = vshll.u32 2131351028, %v1026
        %v1036 = vshrl.u32 2102212464, %v1027
        %v1037 = vor.u32 %v1035, %v1036
        %v1038 = vshll.u32 2102212464, %v1026
        %v1039 = vshrl.u32 920167782, %v1027
        %v1040 = vor.u32 %v1038, %v1039
        %v1041 = vshll.u32 920167782, %v1026
        %v1042 = vshrl.u32 1326507024, %v1027
        %v1043 = vor.u32 %v1041, %v1042
        %vm1044 = vcmp.lt.s32.totalorder %v1025, 1
        %vm1045 = vcmp.lt.s32.totalorder %v1025, 2
        %vm1046 = vcmp.lt.s32.totalorder %v1025, 3
        %vm1047 = vcmp.lt.s32.totalorder %v1025, 4
        %v1048 = vsel %vm1044, %v1028, %v1031
        %v1049 = vsel %vm1047, %v1037, 2102212464
        %v1050 = vsel %vm1046, %v1034, %v1049
        %v1051 = vsel %vm1045, %v1048, %v1050
        %v1052 = vsel %vm1044, %v1031, %v1034
        %v1053 = vsel %vm1047, %v1040, 920167782
        %v1054 = vsel %vm1046, %v1037, %v1053
        %v1055 = vsel %vm1045, %v1052, %v1054
        %v1056 = vsel %vm1044, %v1034, %v1037
        %v1057 = vsel %vm1047, %v1043, 1326507024
        %v1058 = vsel %vm1046, %v1040, %v1057
        %v1059 = vsel %vm1045, %v1056, %v1058
        %v1060 = vshll.u32 %v1020, 8
        %v1061 = vmul.u32.u64.compose %v1060, %v1059
        %v1062 = vextract.low.u32 %v1061
        %v1063 = vextract.high.u32 %v1061
        %v1064 = vmul.u32.u64.compose %v1060, %v1055
        %v1065 = vextract.low.u32 %v1064
        %v1066 = vextract.high.u32 %v1064
        %v1067 = vmul.u32 %v1060, %v1051
        %v1068 = vadd.s32 %v1063, %v1065
        %vm1069 = vc.u32 %v1063, %v1065
        %v1070 = vadd.s32 %v1066, 1
        %v1071 = vsel %vm1069, %v1070, %v1066
        %v1072 = vadd.s32 %v1067, %v1071
        %v1073 = vadd.s32 %v1072, 536870912
        %v1074 = vshrl.u32 %v1073, 30
        %v1075 = vshll.u32 %v1074, 30
        %v1076 = vsub.s32 %v1072, %v1075
        %vm1077 = vcmp.lt.s32.totalorder %v1076, 0
        %v1078 = vsub.s32 0, %v1076
        %v1079 = vsel %vm1077, %v1078, %v1076
        %v1080 = vclz %v1079
        %v1081 = vsub.s32 %v1080, 2
        %vm1082 = vcmp.gt.s32.totalorder 0, %v1081
        %v1083 = vsel %vm1082, 0, %v1081
        %v1084 = vsub.s32 32, %v1083
        %v1085 = vshll.u32 %v1076, %v1083
        %v1086 = vshrl.u32 %v1068, %v1084
        %v1087 = vor.u32 %v1085, %v1086
        %v1088 = vsub.s32 4294967266, %v1083
        %v1089 = vadd.s32 %v1088, 127
        %v1090 = vshll.u32 %v1089, 23
        %v1091 = vor.u32 4788187, %v1090
        %v1092 = vand.u32 2147483647, %v1091
        %v1094 = vcvt.s32.f32 %v1087
        %v1095 = vmul.f32 %v1094, %v1092
        %v1096 = vxor.u32 %v1095, 2147483648
        %v1097 = vsel %vm1014, %v1096, %v1095
        %v1098 = vsub.s32 4, %v1074
        %v1099 = vsel %vm1014, %v1098, %v1074
        %v1100 = vsel %vm1013, %v330, %v1097
        %v1101 = vsel %vm1013, 0, %v1099
        %v1102 = vcosq.f32.pop %v1100
        %v1103 = vsinq.f32.pop %v1100
        %vm1104 = vweird.f32 %v330
        %v1105 = vadd.s32 %v1101, 3
        %v1106 = vand.u32 %v1105, 3
        %vm1107 = vcmp.lt.s32.totalorder %v1106, 2
        %vm1108 = vcmp.eq.s32.totalorder %v1106, 0
        %v1109 = vxor.u32 %v1103, 2147483648
        %v1110 = vsel %vm1108, %v1102, %v1109
        %vm1111 = vcmp.eq.s32.totalorder %v1106, 2
        %v1112 = vxor.u32 %v1102, 2147483648
        %v1113 = vsel %vm1111, %v1112, %v1103
        %v1114 = vsel %vm1107, %v1110, %v1113
        %v1115 = vsel %vm1104, nan, %v1114
        %v1116 = vand.u32 2147483647, %v336
        %vm1117 = vcmp.le.f32.partialorder %v1116, 0.7853982
        %vm1118 = vcmp.lt.s32.totalorder %v336, 0
        %v1119 = vand.u32 %v336, 2139095040
        %v1120 = vshrl.u32 %v1119, 23
        %v1121 = vsub.s32 %v1120, 127
        %v1122 = vand.u32 2147483647, %v336
        %v1123 = vand.u32 %v1122, 8388607
        %v1124 = vor.u32 %v1123, 8388608
        %v1125 = vsub.s32 0, %v1124
        %v1126 = vadd.s32 %v1121, 1
        %vm1127 = vcmp.gt.s32.totalorder %v1126, 0
        %v1128 = vsel %vm1127, %v1126, 0
        %v1129 = vshrl.u32 %v1128, 5
        %v1130 = vand.u32 %v1128, 31
        %v1131 = vsub.s32 32, %v1130
        %v1132 = vshrl.u32 683565275, %v1131
        %v1133 = vshll.u32 683565275, %v1130
        %v1134 = vshrl.u32 2475754826, %v1131
        %v1135 = vor.u32 %v1133, %v1134
        %v1136 = vshll.u32 2475754826, %v1130
        %v1137 = vshrl.u32 2131351028, %v1131
        %v1138 = vor.u32 %v1136, %v1137
        %v1139 = vshll.u32 2131351028, %v1130
        %v1140 = vshrl.u32 2102212464, %v1131
        %v1141 = vor.u32 %v1139, %v1140
        %v1142 = vshll.u32 2102212464, %v1130
        %v1143 = vshrl.u32 920167782, %v1131
        %v1144 = vor.u32 %v1142, %v1143
        %v1145 = vshll.u32 920167782, %v1130
        %v1146 = vshrl.u32 1326507024, %v1131
        %v1147 = vor.u32 %v1145, %v1146
        %vm1148 = vcmp.lt.s32.totalorder %v1129, 1
        %vm1149 = vcmp.lt.s32.totalorder %v1129, 2
        %vm1150 = vcmp.lt.s32.totalorder %v1129, 3
        %vm1151 = vcmp.lt.s32.totalorder %v1129, 4
        %v1152 = vsel %vm1148, %v1132, %v1135
        %v1153 = vsel %vm1151, %v1141, 2102212464
        %v1154 = vsel %vm1150, %v1138, %v1153
        %v1155 = vsel %vm1149, %v1152, %v1154
        %v1156 = vsel %vm1148, %v1135, %v1138
        %v1157 = vsel %vm1151, %v1144, 920167782
        %v1158 = vsel %vm1150, %v1141, %v1157
        %v1159 = vsel %vm1149, %v1156, %v1158
        %v1160 = vsel %vm1148, %v1138, %v1141
        %v1161 = vsel %vm1151, %v1147, 1326507024
        %v1162 = vsel %vm1150, %v1144, %v1161
        %v1163 = vsel %vm1149, %v1160, %v1162
        %v1164 = vshll.u32 %v1124, 8
        %v1165 = vmul.u32.u64.compose %v1164, %v1163
        %v1166 = vextract.low.u32 %v1165
        %v1167 = vextract.high.u32 %v1165
        %v1168 = vmul.u32.u64.compose %v1164, %v1159
        %v1169 = vextract.low.u32 %v1168
        %v1170 = vextract.high.u32 %v1168
        %v1171 = vmul.u32 %v1164, %v1155
        %v1172 = vadd.s32 %v1167, %v1169
        %vm1173 = vc.u32 %v1167, %v1169
        %v1174 = vadd.s32 %v1170, 1
        %v1175 = vsel %vm1173, %v1174, %v1170
        %v1176 = vadd.s32 %v1171, %v1175
        %v1177 = vadd.s32 %v1176, 536870912
        %v1178 = vshrl.u32 %v1177, 30
        %v1179 = vshll.u32 %v1178, 30
        %v1180 = vsub.s32 %v1176, %v1179
        %vm1181 = vcmp.lt.s32.totalorder %v1180, 0
        %v1182 = vsub.s32 0, %v1180
        %v1183 = vsel %vm1181, %v1182, %v1180
        %v1184 = vclz %v1183
        %v1185 = vsub.s32 %v1184, 2
        %vm1186 = vcmp.gt.s32.totalorder 0, %v1185
        %v1187 = vsel %vm1186, 0, %v1185
        %v1188 = vsub.s32 32, %v1187
        %v1189 = vshll.u32 %v1180, %v1187
        %v1190 = vshrl.u32 %v1172, %v1188
        %v1191 = vor.u32 %v1189, %v1190
        %v1192 = vsub.s32 4294967266, %v1187
        %v1193 = vadd.s32 %v1192, 127
        %v1194 = vshll.u32 %v1193, 23
        %v1195 = vor.u32 4788187, %v1194
        %v1196 = vand.u32 2147483647, %v1195
        %v1198 = vcvt.s32.f32 %v1191
        %v1199 = vmul.f32 %v1198, %v1196
        %v1200 = vxor.u32 %v1199, 2147483648
        %v1201 = vsel %vm1118, %v1200, %v1199
        %v1202 = vsub.s32 4, %v1178
        %v1203 = vsel %vm1118, %v1202, %v1178
        %v1204 = vsel %vm1117, %v336, %v1201
        %v1205 = vsel %vm1117, 0, %v1203
        %v1206 = vcosq.f32.pop %v1204
        %v1207 = vsinq.f32.pop %v1204
        %vm1208 = vweird.f32 %v336
        %v1209 = vadd.s32 %v1205, 3
        %v1210 = vand.u32 %v1209, 3
        %vm1211 = vcmp.lt.s32.totalorder %v1210, 2
        %vm1212 = vcmp.eq.s32.totalorder %v1210, 0
        %v1213 = vxor.u32 %v1207, 2147483648
        %v1214 = vsel %vm1212, %v1206, %v1213
        %vm1215 = vcmp.eq.s32.totalorder %v1210, 2
        %v1216 = vxor.u32 %v1206, 2147483648
        %v1217 = vsel %vm1215, %v1216, %v1207
        %v1218 = vsel %vm1211, %v1214, %v1217
        %v1219 = vsel %vm1208, nan, %v1218
        %v1220 = vand.u32 2147483647, %v342
        %vm1221 = vcmp.le.f32.partialorder %v1220, 0.7853982
        %vm1222 = vcmp.lt.s32.totalorder %v342, 0
        %v1223 = vand.u32 %v342, 2139095040
        %v1224 = vshrl.u32 %v1223, 23
        %v1225 = vsub.s32 %v1224, 127
        %v1226 = vand.u32 2147483647, %v342
        %v1227 = vand.u32 %v1226, 8388607
        %v1228 = vor.u32 %v1227, 8388608
        %v1229 = vsub.s32 0, %v1228
        %v1230 = vadd.s32 %v1225, 1
        %vm1231 = vcmp.gt.s32.totalorder %v1230, 0
        %v1232 = vsel %vm1231, %v1230, 0
        %v1233 = vshrl.u32 %v1232, 5
        %v1234 = vand.u32 %v1232, 31
        %v1235 = vsub.s32 32, %v1234
        %v1236 = vshrl.u32 683565275, %v1235
        %v1237 = vshll.u32 683565275, %v1234
        %v1238 = vshrl.u32 2475754826, %v1235
        %v1239 = vor.u32 %v1237, %v1238
        %v1240 = vshll.u32 2475754826, %v1234
        %v1241 = vshrl.u32 2131351028, %v1235
        %v1242 = vor.u32 %v1240, %v1241
        %v1243 = vshll.u32 2131351028, %v1234
        %v1244 = vshrl.u32 2102212464, %v1235
        %v1245 = vor.u32 %v1243, %v1244
        %v1246 = vshll.u32 2102212464, %v1234
        %v1247 = vshrl.u32 920167782, %v1235
        %v1248 = vor.u32 %v1246, %v1247
        %v1249 = vshll.u32 920167782, %v1234
        %v1250 = vshrl.u32 1326507024, %v1235
        %v1251 = vor.u32 %v1249, %v1250
        %vm1252 = vcmp.lt.s32.totalorder %v1233, 1
        %vm1253 = vcmp.lt.s32.totalorder %v1233, 2
        %vm1254 = vcmp.lt.s32.totalorder %v1233, 3
        %vm1255 = vcmp.lt.s32.totalorder %v1233, 4
        %v1256 = vsel %vm1252, %v1236, %v1239
        %v1257 = vsel %vm1255, %v1245, 2102212464
        %v1258 = vsel %vm1254, %v1242, %v1257
        %v1259 = vsel %vm1253, %v1256, %v1258
        %v1260 = vsel %vm1252, %v1239, %v1242
        %v1261 = vsel %vm1255, %v1248, 920167782
        %v1262 = vsel %vm1254, %v1245, %v1261
        %v1263 = vsel %vm1253, %v1260, %v1262
        %v1264 = vsel %vm1252, %v1242, %v1245
        %v1265 = vsel %vm1255, %v1251, 1326507024
        %v1266 = vsel %vm1254, %v1248, %v1265
        %v1267 = vsel %vm1253, %v1264, %v1266
        %v1268 = vshll.u32 %v1228, 8
        %v1269 = vmul.u32.u64.compose %v1268, %v1267
        %v1270 = vextract.low.u32 %v1269
        %v1271 = vextract.high.u32 %v1269
        %v1272 = vmul.u32.u64.compose %v1268, %v1263
        %v1273 = vextract.low.u32 %v1272
        %v1274 = vextract.high.u32 %v1272
        %v1275 = vmul.u32 %v1268, %v1259
        %v1276 = vadd.s32 %v1271, %v1273
        %vm1277 = vc.u32 %v1271, %v1273
        %v1278 = vadd.s32 %v1274, 1
        %v1279 = vsel %vm1277, %v1278, %v1274
        %v1280 = vadd.s32 %v1275, %v1279
        %v1281 = vadd.s32 %v1280, 536870912
        %v1282 = vshrl.u32 %v1281, 30
        %v1283 = vshll.u32 %v1282, 30
        %v1284 = vsub.s32 %v1280, %v1283
        %vm1285 = vcmp.lt.s32.totalorder %v1284, 0
        %v1286 = vsub.s32 0, %v1284
        %v1287 = vsel %vm1285, %v1286, %v1284
        %v1288 = vclz %v1287
        %v1289 = vsub.s32 %v1288, 2
        %vm1290 = vcmp.gt.s32.totalorder 0, %v1289
        %v1291 = vsel %vm1290, 0, %v1289
        %v1292 = vsub.s32 32, %v1291
        %v1293 = vshll.u32 %v1284, %v1291
        %v1294 = vshrl.u32 %v1276, %v1292
        %v1295 = vor.u32 %v1293, %v1294
        %v1296 = vsub.s32 4294967266, %v1291
        %v1297 = vadd.s32 %v1296, 127
        %v1298 = vshll.u32 %v1297, 23
        %v1299 = vor.u32 4788187, %v1298
        %v1300 = vand.u32 2147483647, %v1299
        %v1302 = vcvt.s32.f32 %v1295
        %v1303 = vmul.f32 %v1302, %v1300
        %v1304 = vxor.u32 %v1303, 2147483648
        %v1305 = vsel %vm1222, %v1304, %v1303
        %v1306 = vsub.s32 4, %v1282
        %v1307 = vsel %vm1222, %v1306, %v1282
        %v1308 = vsel %vm1221, %v342, %v1305
        %v1309 = vsel %vm1221, 0, %v1307
        %v1310 = vcosq.f32.pop %v1308
        %v1311 = vsinq.f32.pop %v1308
        %vm1312 = vweird.f32 %v342
        %v1313 = vadd.s32 %v1309, 3
        %v1314 = vand.u32 %v1313, 3
        %vm1315 = vcmp.lt.s32.totalorder %v1314, 2
        %vm1316 = vcmp.eq.s32.totalorder %v1314, 0
        %v1317 = vxor.u32 %v1311, 2147483648
        %v1318 = vsel %vm1316, %v1310, %v1317
        %vm1319 = vcmp.eq.s32.totalorder %v1314, 2
        %v1320 = vxor.u32 %v1310, 2147483648
        %v1321 = vsel %vm1319, %v1320, %v1311
        %v1322 = vsel %vm1315, %v1318, %v1321
        %v1323 = vsel %vm1312, nan, %v1322
        %v1324 = vand.u32 2147483647, %v348
        %vm1325 = vcmp.le.f32.partialorder %v1324, 0.7853982
        %vm1326 = vcmp.lt.s32.totalorder %v348, 0
        %v1327 = vand.u32 %v348, 2139095040
        %v1328 = vshrl.u32 %v1327, 23
        %v1329 = vsub.s32 %v1328, 127
        %v1330 = vand.u32 2147483647, %v348
        %v1331 = vand.u32 %v1330, 8388607
        %v1332 = vor.u32 %v1331, 8388608
        %v1333 = vsub.s32 0, %v1332
        %v1334 = vadd.s32 %v1329, 1
        %vm1335 = vcmp.gt.s32.totalorder %v1334, 0
        %v1336 = vsel %vm1335, %v1334, 0
        %v1337 = vshrl.u32 %v1336, 5
        %v1338 = vand.u32 %v1336, 31
        %v1339 = vsub.s32 32, %v1338
        %v1340 = vshrl.u32 683565275, %v1339
        %v1341 = vshll.u32 683565275, %v1338
        %v1342 = vshrl.u32 2475754826, %v1339
        %v1343 = vor.u32 %v1341, %v1342
        %v1344 = vshll.u32 2475754826, %v1338
        %v1345 = vshrl.u32 2131351028, %v1339
        %v1346 = vor.u32 %v1344, %v1345
        %v1347 = vshll.u32 2131351028, %v1338
        %v1348 = vshrl.u32 2102212464, %v1339
        %v1349 = vor.u32 %v1347, %v1348
        %v1350 = vshll.u32 2102212464, %v1338
        %v1351 = vshrl.u32 920167782, %v1339
        %v1352 = vor.u32 %v1350, %v1351
        %v1353 = vshll.u32 920167782, %v1338
        %v1354 = vshrl.u32 1326507024, %v1339
        %v1355 = vor.u32 %v1353, %v1354
        %vm1356 = vcmp.lt.s32.totalorder %v1337, 1
        %vm1357 = vcmp.lt.s32.totalorder %v1337, 2
        %vm1358 = vcmp.lt.s32.totalorder %v1337, 3
        %vm1359 = vcmp.lt.s32.totalorder %v1337, 4
        %v1360 = vsel %vm1356, %v1340, %v1343
        %v1361 = vsel %vm1359, %v1349, 2102212464
        %v1362 = vsel %vm1358, %v1346, %v1361
        %v1363 = vsel %vm1357, %v1360, %v1362
        %v1364 = vsel %vm1356, %v1343, %v1346
        %v1365 = vsel %vm1359, %v1352, 920167782
        %v1366 = vsel %vm1358, %v1349, %v1365
        %v1367 = vsel %vm1357, %v1364, %v1366
        %v1368 = vsel %vm1356, %v1346, %v1349
        %v1369 = vsel %vm1359, %v1355, 1326507024
        %v1370 = vsel %vm1358, %v1352, %v1369
        %v1371 = vsel %vm1357, %v1368, %v1370
        %v1372 = vshll.u32 %v1332, 8
        %v1373 = vmul.u32.u64.compose %v1372, %v1371
        %v1374 = vextract.low.u32 %v1373
        %v1375 = vextract.high.u32 %v1373
        %v1376 = vmul.u32.u64.compose %v1372, %v1367
        %v1377 = vextract.low.u32 %v1376
        %v1378 = vextract.high.u32 %v1376
        %v1379 = vmul.u32 %v1372, %v1363
        %v1380 = vadd.s32 %v1375, %v1377
        %vm1381 = vc.u32 %v1375, %v1377
        %v1382 = vadd.s32 %v1378, 1
        %v1383 = vsel %vm1381, %v1382, %v1378
        %v1384 = vadd.s32 %v1379, %v1383
        %v1385 = vadd.s32 %v1384, 536870912
        %v1386 = vshrl.u32 %v1385, 30
        %v1387 = vshll.u32 %v1386, 30
        %v1388 = vsub.s32 %v1384, %v1387
        %vm1389 = vcmp.lt.s32.totalorder %v1388, 0
        %v1390 = vsub.s32 0, %v1388
        %v1391 = vsel %vm1389, %v1390, %v1388
        %v1392 = vclz %v1391
        %v1393 = vsub.s32 %v1392, 2
        %vm1394 = vcmp.gt.s32.totalorder 0, %v1393
        %v1395 = vsel %vm1394, 0, %v1393
        %v1396 = vsub.s32 32, %v1395
        %v1397 = vshll.u32 %v1388, %v1395
        %v1398 = vshrl.u32 %v1380, %v1396
        %v1399 = vor.u32 %v1397, %v1398
        %v1400 = vsub.s32 4294967266, %v1395
        %v1401 = vadd.s32 %v1400, 127
        %v1402 = vshll.u32 %v1401, 23
        %v1403 = vor.u32 4788187, %v1402
        %v1404 = vand.u32 2147483647, %v1403
        %v1406 = vcvt.s32.f32 %v1399
        %v1407 = vmul.f32 %v1406, %v1404
        %v1408 = vxor.u32 %v1407, 2147483648
        %v1409 = vsel %vm1326, %v1408, %v1407
        %v1410 = vsub.s32 4, %v1386
        %v1411 = vsel %vm1326, %v1410, %v1386
        %v1412 = vsel %vm1325, %v348, %v1409
        %v1413 = vsel %vm1325, 0, %v1411
        %v1414 = vcosq.f32.pop %v1412
        %v1415 = vsinq.f32.pop %v1412
        %vm1416 = vweird.f32 %v348
        %v1417 = vadd.s32 %v1413, 3
        %v1418 = vand.u32 %v1417, 3
        %vm1419 = vcmp.lt.s32.totalorder %v1418, 2
        %vm1420 = vcmp.eq.s32.totalorder %v1418, 0
        %v1421 = vxor.u32 %v1415, 2147483648
        %v1422 = vsel %vm1420, %v1414, %v1421
        %vm1423 = vcmp.eq.s32.totalorder %v1418, 2
        %v1424 = vxor.u32 %v1414, 2147483648
        %v1425 = vsel %vm1423, %v1424, %v1415
        %v1426 = vsel %vm1419, %v1422, %v1425
        %v1427 = vsel %vm1416, nan, %v1426
        %v1428 = vand.u32 2147483647, %v354
        %vm1429 = vcmp.le.f32.partialorder %v1428, 0.7853982
        %vm1430 = vcmp.lt.s32.totalorder %v354, 0
        %v1431 = vand.u32 %v354, 2139095040
        %v1432 = vshrl.u32 %v1431, 23
        %v1433 = vsub.s32 %v1432, 127
        %v1434 = vand.u32 2147483647, %v354
        %v1435 = vand.u32 %v1434, 8388607
        %v1436 = vor.u32 %v1435, 8388608
        %v1437 = vsub.s32 0, %v1436
        %v1438 = vadd.s32 %v1433, 1
        %vm1439 = vcmp.gt.s32.totalorder %v1438, 0
        %v1440 = vsel %vm1439, %v1438, 0
        %v1441 = vshrl.u32 %v1440, 5
        %v1442 = vand.u32 %v1440, 31
        %v1443 = vsub.s32 32, %v1442
        %v1444 = vshrl.u32 683565275, %v1443
        %v1445 = vshll.u32 683565275, %v1442
        %v1446 = vshrl.u32 2475754826, %v1443
        %v1447 = vor.u32 %v1445, %v1446
        %v1448 = vshll.u32 2475754826, %v1442
        %v1449 = vshrl.u32 2131351028, %v1443
        %v1450 = vor.u32 %v1448, %v1449
        %v1451 = vshll.u32 2131351028, %v1442
        %v1452 = vshrl.u32 2102212464, %v1443
        %v1453 = vor.u32 %v1451, %v1452
        %v1454 = vshll.u32 2102212464, %v1442
        %v1455 = vshrl.u32 920167782, %v1443
        %v1456 = vor.u32 %v1454, %v1455
        %v1457 = vshll.u32 920167782, %v1442
        %v1458 = vshrl.u32 1326507024, %v1443
        %v1459 = vor.u32 %v1457, %v1458
        %vm1460 = vcmp.lt.s32.totalorder %v1441, 1
        %vm1461 = vcmp.lt.s32.totalorder %v1441, 2
        %vm1462 = vcmp.lt.s32.totalorder %v1441, 3
        %vm1463 = vcmp.lt.s32.totalorder %v1441, 4
        %v1464 = vsel %vm1460, %v1444, %v1447
        %v1465 = vsel %vm1463, %v1453, 2102212464
        %v1466 = vsel %vm1462, %v1450, %v1465
        %v1467 = vsel %vm1461, %v1464, %v1466
        %v1468 = vsel %vm1460, %v1447, %v1450
        %v1469 = vsel %vm1463, %v1456, 920167782
        %v1470 = vsel %vm1462, %v1453, %v1469
        %v1471 = vsel %vm1461, %v1468, %v1470
        %v1472 = vsel %vm1460, %v1450, %v1453
        %v1473 = vsel %vm1463, %v1459, 1326507024
        %v1474 = vsel %vm1462, %v1456, %v1473
        %v1475 = vsel %vm1461, %v1472, %v1474
        %v1476 = vshll.u32 %v1436, 8
        %v1477 = vmul.u32.u64.compose %v1476, %v1475
        %v1478 = vextract.low.u32 %v1477
        %v1479 = vextract.high.u32 %v1477
        %v1480 = vmul.u32.u64.compose %v1476, %v1471
        %v1481 = vextract.low.u32 %v1480
        %v1482 = vextract.high.u32 %v1480
        %v1483 = vmul.u32 %v1476, %v1467
        %v1484 = vadd.s32 %v1479, %v1481
        %vm1485 = vc.u32 %v1479, %v1481
        %v1486 = vadd.s32 %v1482, 1
        %v1487 = vsel %vm1485, %v1486, %v1482
        %v1488 = vadd.s32 %v1483, %v1487
        %v1489 = vadd.s32 %v1488, 536870912
        %v1490 = vshrl.u32 %v1489, 30
        %v1491 = vshll.u32 %v1490, 30
        %v1492 = vsub.s32 %v1488, %v1491
        %vm1493 = vcmp.lt.s32.totalorder %v1492, 0
        %v1494 = vsub.s32 0, %v1492
        %v1495 = vsel %vm1493, %v1494, %v1492
        %v1496 = vclz %v1495
        %v1497 = vsub.s32 %v1496, 2
        %vm1498 = vcmp.gt.s32.totalorder 0, %v1497
        %v1499 = vsel %vm1498, 0, %v1497
        %v1500 = vsub.s32 32, %v1499
        %v1501 = vshll.u32 %v1492, %v1499
        %v1502 = vshrl.u32 %v1484, %v1500
        %v1503 = vor.u32 %v1501, %v1502
        %v1504 = vsub.s32 4294967266, %v1499
        %v1505 = vadd.s32 %v1504, 127
        %v1506 = vshll.u32 %v1505, 23
        %v1507 = vor.u32 4788187, %v1506
        %v1508 = vand.u32 2147483647, %v1507
        %v1510 = vcvt.s32.f32 %v1503
        %v1511 = vmul.f32 %v1510, %v1508
        %v1512 = vxor.u32 %v1511, 2147483648
        %v1513 = vsel %vm1430, %v1512, %v1511
        %v1514 = vsub.s32 4, %v1490
        %v1515 = vsel %vm1430, %v1514, %v1490
        %v1516 = vsel %vm1429, %v354, %v1513
        %v1517 = vsel %vm1429, 0, %v1515
        %v1518 = vcosq.f32.pop %v1516
        %v1519 = vsinq.f32.pop %v1516
        %vm1520 = vweird.f32 %v354
        %v1521 = vadd.s32 %v1517, 3
        %v1522 = vand.u32 %v1521, 3
        %vm1523 = vcmp.lt.s32.totalorder %v1522, 2
        %vm1524 = vcmp.eq.s32.totalorder %v1522, 0
        %v1525 = vxor.u32 %v1519, 2147483648
        %v1526 = vsel %vm1524, %v1518, %v1525
        %vm1527 = vcmp.eq.s32.totalorder %v1522, 2
        %v1528 = vxor.u32 %v1518, 2147483648
        %v1529 = vsel %vm1527, %v1528, %v1519
        %v1530 = vsel %vm1523, %v1526, %v1529
        %v1531 = vsel %vm1520, nan, %v1530
        %v1532 = vand.u32 2147483647, %v360
        %vm1533 = vcmp.le.f32.partialorder %v1532, 0.7853982
        %vm1534 = vcmp.lt.s32.totalorder %v360, 0
        %v1535 = vand.u32 %v360, 2139095040
        %v1536 = vshrl.u32 %v1535, 23
        %v1537 = vsub.s32 %v1536, 127
        %v1538 = vand.u32 2147483647, %v360
        %v1539 = vand.u32 %v1538, 8388607
        %v1540 = vor.u32 %v1539, 8388608
        %v1541 = vsub.s32 0, %v1540
        %v1542 = vadd.s32 %v1537, 1
        %vm1543 = vcmp.gt.s32.totalorder %v1542, 0
        %v1544 = vsel %vm1543, %v1542, 0
        %v1545 = vshrl.u32 %v1544, 5
        %v1546 = vand.u32 %v1544, 31
        %v1547 = vsub.s32 32, %v1546
        %v1548 = vshrl.u32 683565275, %v1547
        %v1549 = vshll.u32 683565275, %v1546
        %v1550 = vshrl.u32 2475754826, %v1547
        %v1551 = vor.u32 %v1549, %v1550
        %v1552 = vshll.u32 2475754826, %v1546
        %v1553 = vshrl.u32 2131351028, %v1547
        %v1554 = vor.u32 %v1552, %v1553
        %v1555 = vshll.u32 2131351028, %v1546
        %v1556 = vshrl.u32 2102212464, %v1547
        %v1557 = vor.u32 %v1555, %v1556
        %v1558 = vshll.u32 2102212464, %v1546
        %v1559 = vshrl.u32 920167782, %v1547
        %v1560 = vor.u32 %v1558, %v1559
        %v1561 = vshll.u32 920167782, %v1546
        %v1562 = vshrl.u32 1326507024, %v1547
        %v1563 = vor.u32 %v1561, %v1562
        %vm1564 = vcmp.lt.s32.totalorder %v1545, 1
        %vm1565 = vcmp.lt.s32.totalorder %v1545, 2
        %vm1566 = vcmp.lt.s32.totalorder %v1545, 3
        %vm1567 = vcmp.lt.s32.totalorder %v1545, 4
        %v1568 = vsel %vm1564, %v1548, %v1551
        %v1569 = vsel %vm1567, %v1557, 2102212464
        %v1570 = vsel %vm1566, %v1554, %v1569
        %v1571 = vsel %vm1565, %v1568, %v1570
        %v1572 = vsel %vm1564, %v1551, %v1554
        %v1573 = vsel %vm1567, %v1560, 920167782
        %v1574 = vsel %vm1566, %v1557, %v1573
        %v1575 = vsel %vm1565, %v1572, %v1574
        %v1576 = vsel %vm1564, %v1554, %v1557
        %v1577 = vsel %vm1567, %v1563, 1326507024
        %v1578 = vsel %vm1566, %v1560, %v1577
        %v1579 = vsel %vm1565, %v1576, %v1578
        %v1580 = vshll.u32 %v1540, 8
        %v1581 = vmul.u32.u64.compose %v1580, %v1579
        %v1582 = vextract.low.u32 %v1581
        %v1583 = vextract.high.u32 %v1581
        %v1584 = vmul.u32.u64.compose %v1580, %v1575
        %v1585 = vextract.low.u32 %v1584
        %v1586 = vextract.high.u32 %v1584
        %v1587 = vmul.u32 %v1580, %v1571
        %v1588 = vadd.s32 %v1583, %v1585
        %vm1589 = vc.u32 %v1583, %v1585
        %v1590 = vadd.s32 %v1586, 1
        %v1591 = vsel %vm1589, %v1590, %v1586
        %v1592 = vadd.s32 %v1587, %v1591
        %v1593 = vadd.s32 %v1592, 536870912
        %v1594 = vshrl.u32 %v1593, 30
        %v1595 = vshll.u32 %v1594, 30
        %v1596 = vsub.s32 %v1592, %v1595
        %vm1597 = vcmp.lt.s32.totalorder %v1596, 0
        %v1598 = vsub.s32 0, %v1596
        %v1599 = vsel %vm1597, %v1598, %v1596
        %v1600 = vclz %v1599
        %v1601 = vsub.s32 %v1600, 2
        %vm1602 = vcmp.gt.s32.totalorder 0, %v1601
        %v1603 = vsel %vm1602, 0, %v1601
        %v1604 = vsub.s32 32, %v1603
        %v1605 = vshll.u32 %v1596, %v1603
        %v1606 = vshrl.u32 %v1588, %v1604
        %v1607 = vor.u32 %v1605, %v1606
        %v1608 = vsub.s32 4294967266, %v1603
        %v1609 = vadd.s32 %v1608, 127
        %v1610 = vshll.u32 %v1609, 23
        %v1611 = vor.u32 4788187, %v1610
        %v1612 = vand.u32 2147483647, %v1611
        %v1614 = vcvt.s32.f32 %v1607
        %v1615 = vmul.f32 %v1614, %v1612
        %v1616 = vxor.u32 %v1615, 2147483648
        %v1617 = vsel %vm1534, %v1616, %v1615
        %v1618 = vsub.s32 4, %v1594
        %v1619 = vsel %vm1534, %v1618, %v1594
        %v1620 = vsel %vm1533, %v360, %v1617
        %v1621 = vsel %vm1533, 0, %v1619
        %v1622 = vcosq.f32.pop %v1620
        %v1623 = vsinq.f32.pop %v1620
        %vm1624 = vweird.f32 %v360
        %v1625 = vadd.s32 %v1621, 3
        %v1626 = vand.u32 %v1625, 3
        %vm1627 = vcmp.lt.s32.totalorder %v1626, 2
        %vm1628 = vcmp.eq.s32.totalorder %v1626, 0
        %v1629 = vxor.u32 %v1623, 2147483648
        %v1630 = vsel %vm1628, %v1622, %v1629
        %vm1631 = vcmp.eq.s32.totalorder %v1626, 2
        %v1632 = vxor.u32 %v1622, 2147483648
        %v1633 = vsel %vm1631, %v1632, %v1623
        %v1634 = vsel %vm1627, %v1630, %v1633
        %v1635 = vsel %vm1624, nan, %v1634
        %v1636 = vand.u32 2147483647, %v366
        %vm1637 = vcmp.le.f32.partialorder %v1636, 0.7853982
        %vm1638 = vcmp.lt.s32.totalorder %v366, 0
        %v1639 = vand.u32 %v366, 2139095040
        %v1640 = vshrl.u32 %v1639, 23
        %v1641 = vsub.s32 %v1640, 127
        %v1642 = vand.u32 2147483647, %v366
        %v1643 = vand.u32 %v1642, 8388607
        %v1644 = vor.u32 %v1643, 8388608
        %v1645 = vsub.s32 0, %v1644
        %v1646 = vadd.s32 %v1641, 1
        %vm1647 = vcmp.gt.s32.totalorder %v1646, 0
        %v1648 = vsel %vm1647, %v1646, 0
        %v1649 = vshrl.u32 %v1648, 5
        %v1650 = vand.u32 %v1648, 31
        %v1651 = vsub.s32 32, %v1650
        %v1652 = vshrl.u32 683565275, %v1651
        %v1653 = vshll.u32 683565275, %v1650
        %v1654 = vshrl.u32 2475754826, %v1651
        %v1655 = vor.u32 %v1653, %v1654
        %v1656 = vshll.u32 2475754826, %v1650
        %v1657 = vshrl.u32 2131351028, %v1651
        %v1658 = vor.u32 %v1656, %v1657
        %v1659 = vshll.u32 2131351028, %v1650
        %v1660 = vshrl.u32 2102212464, %v1651
        %v1661 = vor.u32 %v1659, %v1660
        %v1662 = vshll.u32 2102212464, %v1650
        %v1663 = vshrl.u32 920167782, %v1651
        %v1664 = vor.u32 %v1662, %v1663
        %v1665 = vshll.u32 920167782, %v1650
        %v1666 = vshrl.u32 1326507024, %v1651
        %v1667 = vor.u32 %v1665, %v1666
        %vm1668 = vcmp.lt.s32.totalorder %v1649, 1
        %vm1669 = vcmp.lt.s32.totalorder %v1649, 2
        %vm1670 = vcmp.lt.s32.totalorder %v1649, 3
        %vm1671 = vcmp.lt.s32.totalorder %v1649, 4
        %v1672 = vsel %vm1668, %v1652, %v1655
        %v1673 = vsel %vm1671, %v1661, 2102212464
        %v1674 = vsel %vm1670, %v1658, %v1673
        %v1675 = vsel %vm1669, %v1672, %v1674
        %v1676 = vsel %vm1668, %v1655, %v1658
        %v1677 = vsel %vm1671, %v1664, 920167782
        %v1678 = vsel %vm1670, %v1661, %v1677
        %v1679 = vsel %vm1669, %v1676, %v1678
        %v1680 = vsel %vm1668, %v1658, %v1661
        %v1681 = vsel %vm1671, %v1667, 1326507024
        %v1682 = vsel %vm1670, %v1664, %v1681
        %v1683 = vsel %vm1669, %v1680, %v1682
        %v1684 = vshll.u32 %v1644, 8
        %v1685 = vmul.u32.u64.compose %v1684, %v1683
        %v1686 = vextract.low.u32 %v1685
        %v1687 = vextract.high.u32 %v1685
        %v1688 = vmul.u32.u64.compose %v1684, %v1679
        %v1689 = vextract.low.u32 %v1688
        %v1690 = vextract.high.u32 %v1688
        %v1691 = vmul.u32 %v1684, %v1675
        %v1692 = vadd.s32 %v1687, %v1689
        %vm1693 = vc.u32 %v1687, %v1689
        %v1694 = vadd.s32 %v1690, 1
        %v1695 = vsel %vm1693, %v1694, %v1690
        %v1696 = vadd.s32 %v1691, %v1695
        %v1697 = vadd.s32 %v1696, 536870912
        %v1698 = vshrl.u32 %v1697, 30
        %v1699 = vshll.u32 %v1698, 30
        %v1700 = vsub.s32 %v1696, %v1699
        %vm1701 = vcmp.lt.s32.totalorder %v1700, 0
        %v1702 = vsub.s32 0, %v1700
        %v1703 = vsel %vm1701, %v1702, %v1700
        %v1704 = vclz %v1703
        %v1705 = vsub.s32 %v1704, 2
        %vm1706 = vcmp.gt.s32.totalorder 0, %v1705
        %v1707 = vsel %vm1706, 0, %v1705
        %v1708 = vsub.s32 32, %v1707
        %v1709 = vshll.u32 %v1700, %v1707
        %v1710 = vshrl.u32 %v1692, %v1708
        %v1711 = vor.u32 %v1709, %v1710
        %v1712 = vsub.s32 4294967266, %v1707
        %v1713 = vadd.s32 %v1712, 127
        %v1714 = vshll.u32 %v1713, 23
        %v1715 = vor.u32 4788187, %v1714
        %v1716 = vand.u32 2147483647, %v1715
        %v1718 = vcvt.s32.f32 %v1711
        %v1719 = vmul.f32 %v1718, %v1716
        %v1720 = vxor.u32 %v1719, 2147483648
        %v1721 = vsel %vm1638, %v1720, %v1719
        %v1722 = vsub.s32 4, %v1698
        %v1723 = vsel %vm1638, %v1722, %v1698
        %v1724 = vsel %vm1637, %v366, %v1721
        %v1725 = vsel %vm1637, 0, %v1723
        %v1726 = vcosq.f32.pop %v1724
        %v1727 = vsinq.f32.pop %v1724
        %vm1728 = vweird.f32 %v366
        %v1729 = vadd.s32 %v1725, 3
        %v1730 = vand.u32 %v1729, 3
        %vm1731 = vcmp.lt.s32.totalorder %v1730, 2
        %vm1732 = vcmp.eq.s32.totalorder %v1730, 0
        %v1733 = vxor.u32 %v1727, 2147483648
        %v1734 = vsel %vm1732, %v1726, %v1733
        %vm1735 = vcmp.eq.s32.totalorder %v1730, 2
        %v1736 = vxor.u32 %v1726, 2147483648
        %v1737 = vsel %vm1735, %v1736, %v1727
        %v1738 = vsel %vm1731, %v1734, %v1737
        %v1739 = vsel %vm1728, nan, %v1738
        %v1740 = vand.u32 2147483647, %v372
        %vm1741 = vcmp.le.f32.partialorder %v1740, 0.7853982
        %vm1742 = vcmp.lt.s32.totalorder %v372, 0
        %v1743 = vand.u32 %v372, 2139095040
        %v1744 = vshrl.u32 %v1743, 23
        %v1745 = vsub.s32 %v1744, 127
        %v1746 = vand.u32 2147483647, %v372
        %v1747 = vand.u32 %v1746, 8388607
        %v1748 = vor.u32 %v1747, 8388608
        %v1749 = vsub.s32 0, %v1748
        %v1750 = vadd.s32 %v1745, 1
        %vm1751 = vcmp.gt.s32.totalorder %v1750, 0
        %v1752 = vsel %vm1751, %v1750, 0
        %v1753 = vshrl.u32 %v1752, 5
        %v1754 = vand.u32 %v1752, 31
        %v1755 = vsub.s32 32, %v1754
        %v1756 = vshrl.u32 683565275, %v1755
        %v1757 = vshll.u32 683565275, %v1754
        %v1758 = vshrl.u32 2475754826, %v1755
        %v1759 = vor.u32 %v1757, %v1758
        %v1760 = vshll.u32 2475754826, %v1754
        %v1761 = vshrl.u32 2131351028, %v1755
        %v1762 = vor.u32 %v1760, %v1761
        %v1763 = vshll.u32 2131351028, %v1754
        %v1764 = vshrl.u32 2102212464, %v1755
        %v1765 = vor.u32 %v1763, %v1764
        %v1766 = vshll.u32 2102212464, %v1754
        %v1767 = vshrl.u32 920167782, %v1755
        %v1768 = vor.u32 %v1766, %v1767
        %v1769 = vshll.u32 920167782, %v1754
        %v1770 = vshrl.u32 1326507024, %v1755
        %v1771 = vor.u32 %v1769, %v1770
        %vm1772 = vcmp.lt.s32.totalorder %v1753, 1
        %vm1773 = vcmp.lt.s32.totalorder %v1753, 2
        %vm1774 = vcmp.lt.s32.totalorder %v1753, 3
        %vm1775 = vcmp.lt.s32.totalorder %v1753, 4
        %v1776 = vsel %vm1772, %v1756, %v1759
        %v1777 = vsel %vm1775, %v1765, 2102212464
        %v1778 = vsel %vm1774, %v1762, %v1777
        %v1779 = vsel %vm1773, %v1776, %v1778
        %v1780 = vsel %vm1772, %v1759, %v1762
        %v1781 = vsel %vm1775, %v1768, 920167782
        %v1782 = vsel %vm1774, %v1765, %v1781
        %v1783 = vsel %vm1773, %v1780, %v1782
        %v1784 = vsel %vm1772, %v1762, %v1765
        %v1785 = vsel %vm1775, %v1771, 1326507024
        %v1786 = vsel %vm1774, %v1768, %v1785
        %v1787 = vsel %vm1773, %v1784, %v1786
        %v1788 = vshll.u32 %v1748, 8
        %v1789 = vmul.u32.u64.compose %v1788, %v1787
        %v1790 = vextract.low.u32 %v1789
        %v1791 = vextract.high.u32 %v1789
        %v1792 = vmul.u32.u64.compose %v1788, %v1783
        %v1793 = vextract.low.u32 %v1792
        %v1794 = vextract.high.u32 %v1792
        %v1795 = vmul.u32 %v1788, %v1779
        %v1796 = vadd.s32 %v1791, %v1793
        %vm1797 = vc.u32 %v1791, %v1793
        %v1798 = vadd.s32 %v1794, 1
        %v1799 = vsel %vm1797, %v1798, %v1794
        %v1800 = vadd.s32 %v1795, %v1799
        %v1801 = vadd.s32 %v1800, 536870912
        %v1802 = vshrl.u32 %v1801, 30
        %v1803 = vshll.u32 %v1802, 30
        %v1804 = vsub.s32 %v1800, %v1803
        %vm1805 = vcmp.lt.s32.totalorder %v1804, 0
        %v1806 = vsub.s32 0, %v1804
        %v1807 = vsel %vm1805, %v1806, %v1804
        %v1808 = vclz %v1807
        %v1809 = vsub.s32 %v1808, 2
        %vm1810 = vcmp.gt.s32.totalorder 0, %v1809
        %v1811 = vsel %vm1810, 0, %v1809
        %v1812 = vsub.s32 32, %v1811
        %v1813 = vshll.u32 %v1804, %v1811
        %v1814 = vshrl.u32 %v1796, %v1812
        %v1815 = vor.u32 %v1813, %v1814
        %v1816 = vsub.s32 4294967266, %v1811
        %v1817 = vadd.s32 %v1816, 127
        %v1818 = vshll.u32 %v1817, 23
        %v1819 = vor.u32 4788187, %v1818
        %v1820 = vand.u32 2147483647, %v1819
        %v1822 = vcvt.s32.f32 %v1815
        %v1823 = vmul.f32 %v1822, %v1820
        %v1824 = vxor.u32 %v1823, 2147483648
        %v1825 = vsel %vm1742, %v1824, %v1823
        %v1826 = vsub.s32 4, %v1802
        %v1827 = vsel %vm1742, %v1826, %v1802
        %v1828 = vsel %vm1741, %v372, %v1825
        %v1829 = vsel %vm1741, 0, %v1827
        %v1830 = vcosq.f32.pop %v1828
        %v1831 = vsinq.f32.pop %v1828
        %vm1832 = vweird.f32 %v372
        %v1833 = vadd.s32 %v1829, 3
        %v1834 = vand.u32 %v1833, 3
        %vm1835 = vcmp.lt.s32.totalorder %v1834, 2
        %vm1836 = vcmp.eq.s32.totalorder %v1834, 0
        %v1837 = vxor.u32 %v1831, 2147483648
        %v1838 = vsel %vm1836, %v1830, %v1837
        %vm1839 = vcmp.eq.s32.totalorder %v1834, 2
        %v1840 = vxor.u32 %v1830, 2147483648
        %v1841 = vsel %vm1839, %v1840, %v1831
        %v1842 = vsel %vm1835, %v1838, %v1841
        %v1843 = vsel %vm1832, nan, %v1842
        %v1844 = vand.u32 2147483647, %v378
        %vm1845 = vcmp.le.f32.partialorder %v1844, 0.7853982
        %vm1846 = vcmp.lt.s32.totalorder %v378, 0
        %v1847 = vand.u32 %v378, 2139095040
        %v1848 = vshrl.u32 %v1847, 23
        %v1849 = vsub.s32 %v1848, 127
        %v1850 = vand.u32 2147483647, %v378
        %v1851 = vand.u32 %v1850, 8388607
        %v1852 = vor.u32 %v1851, 8388608
        %v1853 = vsub.s32 0, %v1852
        %v1854 = vadd.s32 %v1849, 1
        %vm1855 = vcmp.gt.s32.totalorder %v1854, 0
        %v1856 = vsel %vm1855, %v1854, 0
        %v1857 = vshrl.u32 %v1856, 5
        %v1858 = vand.u32 %v1856, 31
        %v1859 = vsub.s32 32, %v1858
        %v1860 = vshrl.u32 683565275, %v1859
        %v1861 = vshll.u32 683565275, %v1858
        %v1862 = vshrl.u32 2475754826, %v1859
        %v1863 = vor.u32 %v1861, %v1862
        %v1864 = vshll.u32 2475754826, %v1858
        %v1865 = vshrl.u32 2131351028, %v1859
        %v1866 = vor.u32 %v1864, %v1865
        %v1867 = vshll.u32 2131351028, %v1858
        %v1868 = vshrl.u32 2102212464, %v1859
        %v1869 = vor.u32 %v1867, %v1868
        %v1870 = vshll.u32 2102212464, %v1858
        %v1871 = vshrl.u32 920167782, %v1859
        %v1872 = vor.u32 %v1870, %v1871
        %v1873 = vshll.u32 920167782, %v1858
        %v1874 = vshrl.u32 1326507024, %v1859
        %v1875 = vor.u32 %v1873, %v1874
        %vm1876 = vcmp.lt.s32.totalorder %v1857, 1
        %vm1877 = vcmp.lt.s32.totalorder %v1857, 2
        %vm1878 = vcmp.lt.s32.totalorder %v1857, 3
        %vm1879 = vcmp.lt.s32.totalorder %v1857, 4
        %v1880 = vsel %vm1876, %v1860, %v1863
        %v1881 = vsel %vm1879, %v1869, 2102212464
        %v1882 = vsel %vm1878, %v1866, %v1881
        %v1883 = vsel %vm1877, %v1880, %v1882
        %v1884 = vsel %vm1876, %v1863, %v1866
        %v1885 = vsel %vm1879, %v1872, 920167782
        %v1886 = vsel %vm1878, %v1869, %v1885
        %v1887 = vsel %vm1877, %v1884, %v1886
        %v1888 = vsel %vm1876, %v1866, %v1869
        %v1889 = vsel %vm1879, %v1875, 1326507024
        %v1890 = vsel %vm1878, %v1872, %v1889
        %v1891 = vsel %vm1877, %v1888, %v1890
        %v1892 = vshll.u32 %v1852, 8
        %v1893 = vmul.u32.u64.compose %v1892, %v1891
        %v1894 = vextract.low.u32 %v1893
        %v1895 = vextract.high.u32 %v1893
        %v1896 = vmul.u32.u64.compose %v1892, %v1887
        %v1897 = vextract.low.u32 %v1896
        %v1898 = vextract.high.u32 %v1896
        %v1899 = vmul.u32 %v1892, %v1883
        %v1900 = vadd.s32 %v1895, %v1897
        %vm1901 = vc.u32 %v1895, %v1897
        %v1902 = vadd.s32 %v1898, 1
        %v1903 = vsel %vm1901, %v1902, %v1898
        %v1904 = vadd.s32 %v1899, %v1903
        %v1905 = vadd.s32 %v1904, 536870912
        %v1906 = vshrl.u32 %v1905, 30
        %v1907 = vshll.u32 %v1906, 30
        %v1908 = vsub.s32 %v1904, %v1907
        %vm1909 = vcmp.lt.s32.totalorder %v1908, 0
        %v1910 = vsub.s32 0, %v1908
        %v1911 = vsel %vm1909, %v1910, %v1908
        %v1912 = vclz %v1911
        %v1913 = vsub.s32 %v1912, 2
        %vm1914 = vcmp.gt.s32.totalorder 0, %v1913
        %v1915 = vsel %vm1914, 0, %v1913
        %v1916 = vsub.s32 32, %v1915
        %v1917 = vshll.u32 %v1908, %v1915
        %v1918 = vshrl.u32 %v1900, %v1916
        %v1919 = vor.u32 %v1917, %v1918
        %v1920 = vsub.s32 4294967266, %v1915
        %v1921 = vadd.s32 %v1920, 127
        %v1922 = vshll.u32 %v1921, 23
        %v1923 = vor.u32 4788187, %v1922
        %v1924 = vand.u32 2147483647, %v1923
        %v1926 = vcvt.s32.f32 %v1919
        %v1927 = vmul.f32 %v1926, %v1924
        %v1928 = vxor.u32 %v1927, 2147483648
        %v1929 = vsel %vm1846, %v1928, %v1927
        %v1930 = vsub.s32 4, %v1906
        %v1931 = vsel %vm1846, %v1930, %v1906
        %v1932 = vsel %vm1845, %v378, %v1929
        %v1933 = vsel %vm1845, 0, %v1931
        %v1934 = vcosq.f32.pop %v1932
        %v1935 = vsinq.f32.pop %v1932
        %vm1936 = vweird.f32 %v378
        %v1937 = vadd.s32 %v1933, 3
        %v1938 = vand.u32 %v1937, 3
        %vm1939 = vcmp.lt.s32.totalorder %v1938, 2
        %vm1940 = vcmp.eq.s32.totalorder %v1938, 0
        %v1941 = vxor.u32 %v1935, 2147483648
        %v1942 = vsel %vm1940, %v1934, %v1941
        %vm1943 = vcmp.eq.s32.totalorder %v1938, 2
        %v1944 = vxor.u32 %v1934, 2147483648
        %v1945 = vsel %vm1943, %v1944, %v1935
        %v1946 = vsel %vm1939, %v1942, %v1945
        %v1947 = vsel %vm1936, nan, %v1946
        %v1948 = vand.u32 2147483647, %v384
        %vm1949 = vcmp.le.f32.partialorder %v1948, 0.7853982
        %vm1950 = vcmp.lt.s32.totalorder %v384, 0
        %v1951 = vand.u32 %v384, 2139095040
        %v1952 = vshrl.u32 %v1951, 23
        %v1953 = vsub.s32 %v1952, 127
        %v1954 = vand.u32 2147483647, %v384
        %v1955 = vand.u32 %v1954, 8388607
        %v1956 = vor.u32 %v1955, 8388608
        %v1957 = vsub.s32 0, %v1956
        %v1958 = vadd.s32 %v1953, 1
        %vm1959 = vcmp.gt.s32.totalorder %v1958, 0
        %v1960 = vsel %vm1959, %v1958, 0
        %v1961 = vshrl.u32 %v1960, 5
        %v1962 = vand.u32 %v1960, 31
        %v1963 = vsub.s32 32, %v1962
        %v1964 = vshrl.u32 683565275, %v1963
        %v1965 = vshll.u32 683565275, %v1962
        %v1966 = vshrl.u32 2475754826, %v1963
        %v1967 = vor.u32 %v1965, %v1966
        %v1968 = vshll.u32 2475754826, %v1962
        %v1969 = vshrl.u32 2131351028, %v1963
        %v1970 = vor.u32 %v1968, %v1969
        %v1971 = vshll.u32 2131351028, %v1962
        %v1972 = vshrl.u32 2102212464, %v1963
        %v1973 = vor.u32 %v1971, %v1972
        %v1974 = vshll.u32 2102212464, %v1962
        %v1975 = vshrl.u32 920167782, %v1963
        %v1976 = vor.u32 %v1974, %v1975
        %v1977 = vshll.u32 920167782, %v1962
        %v1978 = vshrl.u32 1326507024, %v1963
        %v1979 = vor.u32 %v1977, %v1978
        %vm1980 = vcmp.lt.s32.totalorder %v1961, 1
        %vm1981 = vcmp.lt.s32.totalorder %v1961, 2
        %vm1982 = vcmp.lt.s32.totalorder %v1961, 3
        %vm1983 = vcmp.lt.s32.totalorder %v1961, 4
        %v1984 = vsel %vm1980, %v1964, %v1967
        %v1985 = vsel %vm1983, %v1973, 2102212464
        %v1986 = vsel %vm1982, %v1970, %v1985
        %v1987 = vsel %vm1981, %v1984, %v1986
        %v1988 = vsel %vm1980, %v1967, %v1970
        %v1989 = vsel %vm1983, %v1976, 920167782
        %v1990 = vsel %vm1982, %v1973, %v1989
        %v1991 = vsel %vm1981, %v1988, %v1990
        %v1992 = vsel %vm1980, %v1970, %v1973
        %v1993 = vsel %vm1983, %v1979, 1326507024
        %v1994 = vsel %vm1982, %v1976, %v1993
        %v1995 = vsel %vm1981, %v1992, %v1994
        %v1996 = vshll.u32 %v1956, 8
        %v1997 = vmul.u32.u64.compose %v1996, %v1995
        %v1998 = vextract.low.u32 %v1997
        %v1999 = vextract.high.u32 %v1997
        %v2000 = vmul.u32.u64.compose %v1996, %v1991
        %v2001 = vextract.low.u32 %v2000
        %v2002 = vextract.high.u32 %v2000
        %v2003 = vmul.u32 %v1996, %v1987
        %v2004 = vadd.s32 %v1999, %v2001
        %vm2005 = vc.u32 %v1999, %v2001
        %v2006 = vadd.s32 %v2002, 1
        %v2007 = vsel %vm2005, %v2006, %v2002
        %v2008 = vadd.s32 %v2003, %v2007
        %v2009 = vadd.s32 %v2008, 536870912
        %v2010 = vshrl.u32 %v2009, 30
        %v2011 = vshll.u32 %v2010, 30
        %v2012 = vsub.s32 %v2008, %v2011
        %vm2013 = vcmp.lt.s32.totalorder %v2012, 0
        %v2014 = vsub.s32 0, %v2012
        %v2015 = vsel %vm2013, %v2014, %v2012
        %v2016 = vclz %v2015
        %v2017 = vsub.s32 %v2016, 2
        %vm2018 = vcmp.gt.s32.totalorder 0, %v2017
        %v2019 = vsel %vm2018, 0, %v2017
        %v2020 = vsub.s32 32, %v2019
        %v2021 = vshll.u32 %v2012, %v2019
        %v2022 = vshrl.u32 %v2004, %v2020
        %v2023 = vor.u32 %v2021, %v2022
        %v2024 = vsub.s32 4294967266, %v2019
        %v2025 = vadd.s32 %v2024, 127
        %v2026 = vshll.u32 %v2025, 23
        %v2027 = vor.u32 4788187, %v2026
        %v2028 = vand.u32 2147483647, %v2027
        %v2030 = vcvt.s32.f32 %v2023
        %v2031 = vmul.f32 %v2030, %v2028
        %v2032 = vxor.u32 %v2031, 2147483648
        %v2033 = vsel %vm1950, %v2032, %v2031
        %v2034 = vsub.s32 4, %v2010
        %v2035 = vsel %vm1950, %v2034, %v2010
        %v2036 = vsel %vm1949, %v384, %v2033
        %v2037 = vsel %vm1949, 0, %v2035
        %v2038 = vcosq.f32.pop %v2036
        %v2039 = vsinq.f32.pop %v2036
        %vm2040 = vweird.f32 %v384
        %v2041 = vadd.s32 %v2037, 3
        %v2042 = vand.u32 %v2041, 3
        %vm2043 = vcmp.lt.s32.totalorder %v2042, 2
        %vm2044 = vcmp.eq.s32.totalorder %v2042, 0
        %v2045 = vxor.u32 %v2039, 2147483648
        %v2046 = vsel %vm2044, %v2038, %v2045
        %vm2047 = vcmp.eq.s32.totalorder %v2042, 2
        %v2048 = vxor.u32 %v2038, 2147483648
        %v2049 = vsel %vm2047, %v2048, %v2039
        %v2050 = vsel %vm2043, %v2046, %v2049
        %v2051 = vsel %vm2040, nan, %v2050
        %v2052 = vadd.f32 %v491, %v296
        %v2053 = vadd.f32 %v595, %v302
        %v2054 = vadd.f32 %v699, %v308
        %v2055 = vadd.f32 %v803, %v314
        %v2056 = vadd.f32 %v907, %v320
        %v2057 = vadd.f32 %v1011, %v326
        %v2058 = vadd.f32 %v1115, %v332
        %v2059 = vadd.f32 %v1219, %v338
        %v2060 = vadd.f32 %v1323, %v344
        %v2061 = vadd.f32 %v1427, %v350
        %v2062 = vadd.f32 %v1531, %v356
        %v2063 = vadd.f32 %v1635, %v362
        %v2064 = vadd.f32 %v1739, %v368
        %v2065 = vadd.f32 %v1843, %v374
        %v2066 = vadd.f32 %v1947, %v380
        %v2067 = vadd.f32 %v2051, %v386
        %2068 = vst [vmem:[%s176] sm:$0xff] %v2052
        %2069 = vst [vmem:[%s176 + $0x8] sm:$0xff] %v2053
        %2070 = vst [vmem:[%s176 + $0x10] sm:$0xff] %v2054
        %2071 = vst [vmem:[%s176 + $0x18] sm:$0xff] %v2055
        %2072 = vst [vmem:[%s176 + $0x20] sm:$0xff] %v2056
        %2073 = vst [vmem:[%s176 + $0x28] sm:$0xff] %v2057
        %2074 = vst [vmem:[%s176 + $0x30] sm:$0xff] %v2058
        %2075 = vst [vmem:[%s176 + $0x38] sm:$0xff] %v2059
        %2076 = vst [vmem:[%s176 + $0x40] sm:$0xff] %v2060
        %2077 = vst [vmem:[%s176 + $0x48] sm:$0xff] %v2061
        %2078 = vst [vmem:[%s176 + $0x50] sm:$0xff] %v2062
        %2079 = vst [vmem:[%s176 + $0x58] sm:$0xff] %v2063
        %2080 = vst [vmem:[%s176 + $0x60] sm:$0xff] %v2064
        %2081 = vst [vmem:[%s176 + $0x68] sm:$0xff] %v2065
        %2082 = vst [vmem:[%s176 + $0x70] sm:$0xff] %v2066
        %2083 = vst [vmem:[%s176 + $0x78] sm:$0xff] %v2067
        %s2084 = sand.u32 %s75, 1
        %s2085 = scalar_lea.sflag [#allocation4], %s2084
        %s2086 = sand.u32 %s75, 1
        %s2087 = smul.addr %s2086, 128
        %s2088 = scalar_lea.vmem [#allocation7], %s2087
        // Predicated region
        $region37: #{tpu_custom_call.1} parent=27 // pred_check
          %p2089 = pneg %p85
        $region38: #{tpu_custom_call.1} parent=27 // pred_check_branch
          %2091 = sbr.rel (%p2089) target = $region40
        $region39: #{tpu_custom_call.1} parent=27 // pred_region
          %s2092 = smul.u32 16, %s20
          %s2094 = ssub.s32 2048, 2048
          %2095 = vsyncadd %s2085, %s2094
          %s2096 = smul.addr %s2092, 128
          %s2097 = scalar_lea.hbm %s2, %s2096
          %s2098 = sshll.u32 %s2088, 4
          %s2099 = int_to_ptr.vmem [resolvable:$true] %s2098
          %2104 = dma.vmem_to_hbm [thread:$0]  %s2099, 2048, %s2097, %s2085, 128, 128, 8
        $region40: #{tpu_custom_call.1} parent=27 // pred_fallthru
          _
      $region28: #{tpu_custom_call.1} parent=5 // pred_fallthru
        _
      %p2105 = scmp.le.s32.totalorder 2, %s15
      // Predicated region
      $region41: #{tpu_custom_call.1} parent=5 // pred_check
        %p2106 = pneg %p2105
      $region42: #{tpu_custom_call.1} parent=5 // pred_check_branch
        %2108 = sbr.rel (%p2106) target = $region44
      $region43: #{tpu_custom_call.1} parent=5 // pred_region
        %s2109 = ssub.s32 %s15, 2
        // Predicated region
        $region45: #{tpu_custom_call.1} parent=43 // pred_check
          %p2110 = pneg %p91
        $region46: #{tpu_custom_call.1} parent=43 // pred_check_branch
          %2112 = sbr.rel (%p2110) target = $region48
        $region47: #{tpu_custom_call.1} parent=43 // pred_region
          %s2113 = sand.u32 %s76, 1
          %s2114 = scalar_lea.sflag [#allocation4], %s2113
          %s2115 = sand.u32 %s76, 1
          %s2116 = smul.addr %s2115, 128
          %s2117 = scalar_lea.vmem [#allocation7], %s2116
          %2118 = dma.done %s2114, 2048
        $region48: #{tpu_custom_call.1} parent=43 // pred_fallthru
          _
      $region44: #{tpu_custom_call.1} parent=5 // pred_fallthru
        _
    $region6: #{tpu_custom_call.1} parent=1 // loop_footer
      %s19 = sadd.s32 1, %s15
    $region7: #{tpu_custom_call.1} parent=1 // loop_footer_branch
      %14 = sbr.rel target = $region3
    $region8: #{tpu_custom_call.1} parent=1 // loop_exit
      _
    %2119 = vsyncpa [#allocation3], 1
    %s2120 = scalar_lea.sflag [#allocation3], 1
    %2121 = vsyncpa %s2120, 1
    %2122 = vsyncpa [#allocation6], 1
    %2123 = vsyncpa [#allocation4], 1
    %s2124 = scalar_lea.sflag [#allocation4], 1
    %2125 = vsyncpa %s2124, 1

</llo_original>
